<compile_context>
chip_gen: v5e
topology: v5e:2x2
jax: 0.10.0
libtpu: 0.0.40
codegen_flags: <defaults>
</compile_context>

<pallas_src>
import jax
import jax.numpy as jnp
from jax import lax
from jax.experimental import pallas as pl
from jax.experimental.pallas import tpu as pltpu


def _round_up(n, m):
    return ((n + m - 1) // m) * m


# ----------------------------- fused kernel -------------------------------- #

def make_lstm_cluster_kernel(T, Bt, D, H, Op, num_layers, unroll):
    """Single fused kernel: all LSTM layers + ReLU + FC head, one batch shard.

    Kernel ref order:
      x2d, (wih, whh, b) * num_layers, w_fc, b_fc, out, gx_scr, hs_scr
    Gate column order of wih/whh/b is (i, f, o, g).
    """

    def kernel(*refs):
        x_ref = refs[0]
        pos = 1
        layers = []
        for _ in range(num_layers):
            layers.append((refs[pos], refs[pos + 1], refs[pos + 2]))
            pos += 3
        wfc_ref, bfc_ref = refs[pos], refs[pos + 1]
        pos += 2
        out_ref = refs[pos]
        gx_scr, hs_scr = refs[pos + 1], refs[pos + 2]

        h_last = None
        for l, (wih_ref, whh_ref, b_ref) in enumerate(layers):
            # -- Phase 1: hoisted input projection, one large matmul -------- #
            layer_in = x_ref[...] if l == 0 else hs_scr[...]
            gx_scr[...] = (
                jnp.dot(layer_in, wih_ref[...],
                        preferred_element_type=jnp.float32)
                + b_ref[...]
            )

            whh = whh_ref[...]          # loop-invariant recurrent weight
            write_hs = l < num_layers - 1

            # -- Phase 2: unrolled recurrence over time --------------------- #
            def body(t, carry):
                h, c = carry
                off = pl.multiple_of(t * Bt, 8)
                gates = gx_scr[pl.ds(off, Bt), :] + jnp.dot(
                    h, whh, preferred_element_type=jnp.float32)
                # gate order (i, f, o, g): sigmoid on first 3H lanes only,
                # tanh on last H lanes only (half the EUP work of full-tile
                # sigmoid + full-tile tanh).
                sig = jax.nn.sigmoid(gates[:, :3 * H])
                i_g = sig[:, 0 * H:1 * H]
                f_g = sig[:, 1 * H:2 * H]
                o_g = sig[:, 2 * H:3 * H]
                g_g = jnp.tanh(gates[:, 3 * H:4 * H])
                c = f_g * c + i_g * g_g
                h = o_g * jnp.tanh(c)
                if write_hs:
                    hs_scr[pl.ds(off, Bt), :] = h
                return (h, c)

            h0 = jnp.zeros((Bt, H), jnp.float32)
            c0 = jnp.zeros((Bt, H), jnp.float32)
            h_last, _ = lax.fori_loop(0, T, body, (h0, c0), unroll=unroll)

        # -- Phase 3: fused ReLU + lane-dense FC head ------------------------ #
        h_relu = jnp.maximum(h_last, 0.0)
        out_ref[...] = (
            jnp.dot(h_relu, wfc_ref[...], preferred_element_type=jnp.float32)
            + bfc_ref[...]
        )

    return kernel


# ------------------------------- wrapper ----------------------------------- #

def lstm_cluster_forward(x_btd, params):
    """Full LSTM_Cluster forward. x_btd: (B, T, input_size) -> (B, output_size)."""
    B, T, D = x_btd.shape
    H = params["layers"][0][1].shape[0]        # whh_t is (H, 4H)
    O = params["w_fc_t"].shape[1]
    num_layers = len(params["layers"])

    # Batch shards: one per v7x TensorCore when batch is big enough; each
    # shard is sublane-aligned. At the toy batch here: 1 shard, grid=(1,).
    Bp = max(8, _round_up(B, 8))
    nshards = 2 if Bp >= 16 else 1
    Bp = _round_up(Bp, 8 * nshards)
    Bt = Bp // nshards

    # Lane-dense FC head: pad output dim to a multiple of 128 lanes.
    Op = _round_up(max(O, 128), 128)

    # Gate reorder (i, f, g, o) -> (i, f, o, g) at parameter-prep time.
    perm = jnp.concatenate([jnp.arange(0, 2 * H),
                            jnp.arange(3 * H, 4 * H),
                            jnp.arange(2 * H, 3 * H)])
    layers_p = [(wih_t[:, perm], whh_t[:, perm], b[:, perm])
                for (wih_t, whh_t, b) in params["layers"]]

    w_fc_p = jnp.zeros((H, Op), jnp.float32).at[:, :O].set(params["w_fc_t"])
    b_fc_p = jnp.zeros((1, Op), jnp.float32).at[:, :O].set(params["b_fc"])

    # time-major, pad batch, group rows so each batch shard is one contiguous
    # (T*Bt, D) block: (B,T,D) -> (T,Bp,D) -> (nshards, T, Bt, D) -> 2D.
    x = jnp.transpose(x_btd, (1, 0, 2)).astype(jnp.float32)       # (T, B, D)
    x = jnp.pad(x, ((0, 0), (0, Bp - B), (0, 0)))                 # (T, Bp, D)
    x = x.reshape(T, nshards, Bt, D).transpose(1, 0, 2, 3)
    x2d = x.reshape(nshards * T * Bt, D)

    unroll = T if T <= 8 else 8
    kernel = make_lstm_cluster_kernel(T, Bt, D, H, Op, num_layers, unroll)

    flat_inputs = [x2d]
    in_specs = [pl.BlockSpec((T * Bt, D), lambda s: (s, 0))]
    for (wih_t, whh_t, b) in layers_p:
        flat_inputs += [wih_t, whh_t, b]
        in_specs += [
            pl.BlockSpec(wih_t.shape, lambda s: (0, 0)),
            pl.BlockSpec(whh_t.shape, lambda s: (0, 0)),
            pl.BlockSpec(b.shape, lambda s: (0, 0)),
        ]
    flat_inputs += [w_fc_p, b_fc_p]
    in_specs += [
        pl.BlockSpec(w_fc_p.shape, lambda s: (0, 0)),
        pl.BlockSpec(b_fc_p.shape, lambda s: (0, 0)),
    ]

    out = pl.pallas_call(
        kernel,
        out_shape=jax.ShapeDtypeStruct((Bp, Op), jnp.float32),
        grid=(nshards,),
        in_specs=in_specs,
        out_specs=pl.BlockSpec((Bt, Op), lambda s: (s, 0)),
        scratch_shapes=[
            pltpu.VMEM((T * Bt, 4 * H), jnp.float32),   # gates_x (current layer)
            pltpu.VMEM((T * Bt, H), jnp.float32),       # hidden states (layer input)
        ],
        compiler_params=pltpu.CompilerParams(
            dimension_semantics=("parallel",),
            vmem_limit_bytes=56 * 1024 * 1024,
        ),
    )(*flat_inputs)
    return out[:B, :O]


# ----------------------- deterministic parameter init ---------------------- #

def init_params(key, input_size, hidden_size, num_layers, output_size):
    params = {"layers": []}
    bound = 1.0 / jnp.sqrt(hidden_size)
    for l in range(num_layers):
        d_in = input_size if l == 0 else hidden_size
        key, k1, k2, k3, k4 = jax.random.split(key, 5)
        w_ih = jax.random.uniform(k1, (4 * hidden_size, d_in),
                                  minval=-bound, maxval=bound, dtype=jnp.float32)
        w_hh = jax.random.uniform(k2, (4 * hidden_size, hidden_size),
                                  minval=-bound, maxval=bound, dtype=jnp.float32)
        b_ih = jax.random.uniform(k3, (4 * hidden_size,),
                                  minval=-bound, maxval=bound, dtype=jnp.float32)
        b_hh = jax.random.uniform(k4, (4 * hidden_size,),
                                  minval=-bound, maxval=bound, dtype=jnp.float32)
        params["layers"].append(
            (w_ih.T, w_hh.T, (b_ih + b_hh)[None, :]))   # torch gate order (i,f,g,o)
    key, k5, k6 = jax.random.split(key, 3)
    fcb = 1.0 / jnp.sqrt(hidden_size)
    w_fc = jax.random.uniform(k5, (output_size, hidden_size),
                              minval=-fcb, maxval=fcb, dtype=jnp.float32)
    b_fc = jax.random.uniform(k6, (output_size,),
                              minval=-fcb, maxval=fcb, dtype=jnp.float32)
    params["w_fc_t"] = w_fc.T
    params["b_fc"] = b_fc[None, :]
    return params


# ----------------------------- reference (pure JAX) ------------------------ #

def reference_forward(x_btd, params):
    x = jnp.transpose(x_btd, (1, 0, 2)).astype(jnp.float32)
    for (w_ih_t, w_hh_t, b) in params["layers"]:
        T, B, _ = x.shape
        H = w_hh_t.shape[0]
        h = jnp.zeros((B, H), jnp.float32)
        c = jnp.zeros((B, H), jnp.float32)
        outs = []
        for t in range(T):
            g = x[t] @ w_ih_t + h @ w_hh_t + b
            i = jax.nn.sigmoid(g[:, 0 * H:1 * H])
            f = jax.nn.sigmoid(g[:, 1 * H:2 * H])
            gg = jnp.tanh(g[:, 2 * H:3 * H])
            o = jax.nn.sigmoid(g[:, 3 * H:4 * H])
            c = f * c + i * gg
            h = o * jnp.tanh(c)
            outs.append(h)
        x = jnp.stack(outs, axis=0)
    h_last = x[-1]
    return jnp.maximum(h_last, 0.0) @ params["w_fc_t"] + params["b_fc"]


# --------------------------------- main ------------------------------------ #

if __name__ == "__main__":
    batch, seq_len = 2, 8
    input_size, hidden_size, num_layers, output_size = 16, 32, 2, 4

    key = jax.random.PRNGKey(0)
    key, kx = jax.random.split(key)
    x = jax.random.normal(kx, (batch, seq_len, input_size), dtype=jnp.float32)

    params = init_params(key, input_size, hidden_size, num_layers, output_size)

    out = lstm_cluster_forward(x, params)
    out = jax.block_until_ready(out)

    ref = reference_forward(x, params)
    assert out.shape == (batch, output_size)
    assert jnp.allclose(out, ref, atol=1e-4, rtol=1e-4), "mismatch vs reference"

    print("KERNEL_OK")
</pallas_src>

<mosaic_0001>
module attributes {stable_mosaic.version = 11 : i64} {
  func.func @kernel(%arg0: i32, %arg1: memref<64x16xf32, #tpu.memory_space<vmem>>, %arg2: memref<16x128xf32, #tpu.memory_space<vmem>>, %arg3: memref<32x128xf32, #tpu.memory_space<vmem>>, %arg4: memref<1x128xf32, #tpu.memory_space<vmem>>, %arg5: memref<32x128xf32, #tpu.memory_space<vmem>>, %arg6: memref<32x128xf32, #tpu.memory_space<vmem>>, %arg7: memref<1x128xf32, #tpu.memory_space<vmem>>, %arg8: memref<32x128xf32, #tpu.memory_space<vmem>>, %arg9: memref<1x128xf32, #tpu.memory_space<vmem>>, %arg10: memref<8x128xf32, #tpu.memory_space<vmem>>, %arg11: memref<64x128xf32, #tpu.memory_space<vmem>>, %arg12: memref<64x32xf32, #tpu.memory_space<vmem>>) attributes {dimension_semantics = [#tpu.dimension_semantics<parallel>], iteration_bounds = array<i64: 1>, scalar_prefetch = 0 : i64, scratch_operands = 2 : i64, tpu.core_type = #tpu.core_type<tc>, window_params = [{transform_indices = @transform_0, window_bounds = array<i64: 64, 16>}, {pipeline_mode = #tpu.pipeline_mode<synchronous>, transform_indices = @transform_1, window_bounds = array<i64: 16, 128>}, {pipeline_mode = #tpu.pipeline_mode<synchronous>, transform_indices = @transform_2, window_bounds = array<i64: 32, 128>}, {pipeline_mode = #tpu.pipeline_mode<synchronous>, transform_indices = @transform_3, window_bounds = array<i64: 1, 128>}, {pipeline_mode = #tpu.pipeline_mode<synchronous>, transform_indices = @transform_4, window_bounds = array<i64: 32, 128>}, {pipeline_mode = #tpu.pipeline_mode<synchronous>, transform_indices = @transform_5, window_bounds = array<i64: 32, 128>}, {pipeline_mode = #tpu.pipeline_mode<synchronous>, transform_indices = @transform_6, window_bounds = array<i64: 1, 128>}, {pipeline_mode = #tpu.pipeline_mode<synchronous>, transform_indices = @transform_7, window_bounds = array<i64: 32, 128>}, {pipeline_mode = #tpu.pipeline_mode<synchronous>, transform_indices = @transform_8, window_bounds = array<i64: 1, 128>}, {transform_indices = @transform_9, window_bounds = array<i64: 8, 128>}]} {
    %c0 = arith.constant 0 : index
    %c0_0 = arith.constant 0 : index
    %0 = vector.load %arg1[%c0, %c0_0] : memref<64x16xf32, #tpu.memory_space<vmem>>, vector<64x16xf32>
    %c0_1 = arith.constant 0 : index
    %c0_2 = arith.constant 0 : index
    %1 = vector.load %arg2[%c0_1, %c0_2] : memref<16x128xf32, #tpu.memory_space<vmem>>, vector<16x128xf32>
    %cst = arith.constant dense<0.000000e+00> : vector<64x128xf32>
    %2 = tpu.matmul %0, %1, %cst {dimension_numbers = #tpu.dot_dimension_numbers<[1], [0], [0], [1], [0, 0, 1, 1], [], []>} : vector<64x16xf32>, vector<16x128xf32>, vector<64x128xf32> -> vector<64x128xf32>
    %c0_3 = arith.constant 0 : index
    %c0_4 = arith.constant 0 : index
    %3 = vector.load %arg4[%c0_3, %c0_4] : memref<1x128xf32, #tpu.memory_space<vmem>>, vector<1x128xf32>
    %4 = vector.broadcast %3 : vector<1x128xf32> to vector<64x128xf32>
    %5 = arith.addf %2, %4 : vector<64x128xf32>
    %c0_5 = arith.constant 0 : index
    %c0_6 = arith.constant 0 : index
    %6 = vector.load %arg11[%c0_5, %c0_6] : memref<64x128xf32, #tpu.memory_space<vmem>>, vector<64x128xf32>
    tpu.vector_store %arg11[%c0_5, %c0_6], %5 {strides = array<i32>} : memref<64x128xf32, #tpu.memory_space<vmem>>, vector<64x128xf32>,
    %c0_7 = arith.constant 0 : index
    %c0_8 = arith.constant 0 : index
    %7 = vector.load %arg3[%c0_7, %c0_8] : memref<32x128xf32, #tpu.memory_space<vmem>>, vector<32x128xf32>
    %cst_9 = arith.constant 0.000000e+00 : f32
    %8 = vector.broadcast %cst_9 : f32 to vector<8x32xf32>
    %cst_10 = arith.constant 0.000000e+00 : f32
    %9 = vector.broadcast %cst_10 : f32 to vector<8x32xf32>
    %c0_i32 = arith.constant 0 : i32
    %c8_i32 = arith.constant 8 : i32
    %10 = arith.muli %c0_i32, %c8_i32 : i32
    %11 = tpu.assume_multiple %10, 8 : i32
    %12 = arith.index_cast %11 : i32 to index
    %c0_11 = arith.constant 0 : index
    %13 = vector.load %arg11[%12, %c0_11] : memref<64x128xf32, #tpu.memory_space<vmem>>, vector<8x128xf32>
    %cst_12 = arith.constant dense<0.000000e+00> : vector<8x128xf32>
    %14 = tpu.matmul %8, %7, %cst_12 {dimension_numbers = #tpu.dot_dimension_numbers<[1], [0], [0], [1], [0, 0, 1, 1], [], []>} : vector<8x32xf32>, vector<32x128xf32>, vector<8x128xf32> -> vector<8x128xf32>
    %15 = arith.addf %13, %14 : vector<8x128xf32>
    %16 = vector.extract_strided_slice %15 {offsets = [0, 0], sizes = [8, 96], strides = [1, 1]} : vector<8x128xf32> to vector<8x96xf32>
    %17 = arith.negf %16 : vector<8x96xf32>
    %18 = math.exp %17 : vector<8x96xf32>
    %cst_13 = arith.constant 1.000000e+00 : f32
    %19 = vector.broadcast %cst_13 : f32 to vector<8x96xf32>
    %20 = arith.addf %19, %18 : vector<8x96xf32>
    %21 = arith.divf %19, %20 : vector<8x96xf32>
    %22 = vector.extract_strided_slice %21 {offsets = [0, 0], sizes = [8, 32], strides = [1, 1]} : vector<8x96xf32> to vector<8x32xf32>
    %23 = vector.extract_strided_slice %21 {offsets = [0, 32], sizes = [8, 32], strides = [1, 1]} : vector<8x96xf32> to vector<8x32xf32>
    %24 = vector.extract_strided_slice %21 {offsets = [0, 64], sizes = [8, 32], strides = [1, 1]} : vector<8x96xf32> to vector<8x32xf32>
    %25 = vector.extract_strided_slice %15 {offsets = [0, 96], sizes = [8, 32], strides = [1, 1]} : vector<8x128xf32> to vector<8x32xf32>
    %26 = math.tanh %25 : vector<8x32xf32>
    %27 = arith.mulf %23, %9 : vector<8x32xf32>
    %28 = arith.mulf %22, %26 : vector<8x32xf32>
    %29 = arith.addf %27, %28 : vector<8x32xf32>
    %30 = math.tanh %29 : vector<8x32xf32>
    %31 = arith.mulf %24, %30 : vector<8x32xf32>
    %32 = arith.index_cast %11 : i32 to index
    %c0_14 = arith.constant 0 : index
    %33 = vector.load %arg12[%32, %c0_14] : memref<64x32xf32, #tpu.memory_space<vmem>>, vector<8x32xf32>
    tpu.vector_store %arg12[%32, %c0_14], %31 {strides = array<i32>} : memref<64x32xf32, #tpu.memory_space<vmem>>, vector<8x32xf32>,
    %c1_i32 = arith.constant 1 : i32
    %c8_i32_15 = arith.constant 8 : i32
    %34 = arith.muli %c1_i32, %c8_i32_15 : i32
    %35 = tpu.assume_multiple %34, 8 : i32
    %36 = arith.index_cast %35 : i32 to index
    %c0_16 = arith.constant 0 : index
    %37 = vector.load %arg11[%36, %c0_16] : memref<64x128xf32, #tpu.memory_space<vmem>>, vector<8x128xf32>
    %cst_17 = arith.constant dense<0.000000e+00> : vector<8x128xf32>
    %38 = tpu.matmul %31, %7, %cst_17 {dimension_numbers = #tpu.dot_dimension_numbers<[1], [0], [0], [1], [0, 0, 1, 1], [], []>} : vector<8x32xf32>, vector<32x128xf32>, vector<8x128xf32> -> vector<8x128xf32>
    %39 = arith.addf %37, %38 : vector<8x128xf32>
    %40 = vector.extract_strided_slice %39 {offsets = [0, 0], sizes = [8, 96], strides = [1, 1]} : vector<8x128xf32> to vector<8x96xf32>
    %41 = arith.negf %40 : vector<8x96xf32>
    %42 = math.exp %41 : vector<8x96xf32>
    %cst_18 = arith.constant 1.000000e+00 : f32
    %43 = vector.broadcast %cst_18 : f32 to vector<8x96xf32>
    %44 = arith.addf %43, %42 : vector<8x96xf32>
    %45 = arith.divf %43, %44 : vector<8x96xf32>
    %46 = vector.extract_strided_slice %45 {offsets = [0, 0], sizes = [8, 32], strides = [1, 1]} : vector<8x96xf32> to vector<8x32xf32>
    %47 = vector.extract_strided_slice %45 {offsets = [0, 32], sizes = [8, 32], strides = [1, 1]} : vector<8x96xf32> to vector<8x32xf32>
    %48 = vector.extract_strided_slice %45 {offsets = [0, 64], sizes = [8, 32], strides = [1, 1]} : vector<8x96xf32> to vector<8x32xf32>
    %49 = vector.extract_strided_slice %39 {offsets = [0, 96], sizes = [8, 32], strides = [1, 1]} : vector<8x128xf32> to vector<8x32xf32>
    %50 = math.tanh %49 : vector<8x32xf32>
    %51 = arith.mulf %47, %29 : vector<8x32xf32>
    %52 = arith.mulf %46, %50 : vector<8x32xf32>
    %53 = arith.addf %51, %52 : vector<8x32xf32>
    %54 = math.tanh %53 : vector<8x32xf32>
    %55 = arith.mulf %48, %54 : vector<8x32xf32>
    %56 = arith.index_cast %35 : i32 to index
    %c0_19 = arith.constant 0 : index
    %57 = vector.load %arg12[%56, %c0_19] : memref<64x32xf32, #tpu.memory_space<vmem>>, vector<8x32xf32>
    tpu.vector_store %arg12[%56, %c0_19], %55 {strides = array<i32>} : memref<64x32xf32, #tpu.memory_space<vmem>>, vector<8x32xf32>,
    %c2_i32 = arith.constant 2 : i32
    %c8_i32_20 = arith.constant 8 : i32
    %58 = arith.muli %c2_i32, %c8_i32_20 : i32
    %59 = tpu.assume_multiple %58, 8 : i32
    %60 = arith.index_cast %59 : i32 to index
    %c0_21 = arith.constant 0 : index
    %61 = vector.load %arg11[%60, %c0_21] : memref<64x128xf32, #tpu.memory_space<vmem>>, vector<8x128xf32>
    %cst_22 = arith.constant dense<0.000000e+00> : vector<8x128xf32>
    %62 = tpu.matmul %55, %7, %cst_22 {dimension_numbers = #tpu.dot_dimension_numbers<[1], [0], [0], [1], [0, 0, 1, 1], [], []>} : vector<8x32xf32>, vector<32x128xf32>, vector<8x128xf32> -> vector<8x128xf32>
    %63 = arith.addf %61, %62 : vector<8x128xf32>
    %64 = vector.extract_strided_slice %63 {offsets = [0, 0], sizes = [8, 96], strides = [1, 1]} : vector<8x128xf32> to vector<8x96xf32>
    %65 = arith.negf %64 : vector<8x96xf32>
    %66 = math.exp %65 : vector<8x96xf32>
    %cst_23 = arith.constant 1.000000e+00 : f32
    %67 = vector.broadcast %cst_23 : f32 to vector<8x96xf32>
    %68 = arith.addf %67, %66 : vector<8x96xf32>
    %69 = arith.divf %67, %68 : vector<8x96xf32>
    %70 = vector.extract_strided_slice %69 {offsets = [0, 0], sizes = [8, 32], strides = [1, 1]} : vector<8x96xf32> to vector<8x32xf32>
    %71 = vector.extract_strided_slice %69 {offsets = [0, 32], sizes = [8, 32], strides = [1, 1]} : vector<8x96xf32> to vector<8x32xf32>
    %72 = vector.extract_strided_slice %69 {offsets = [0, 64], sizes = [8, 32], strides = [1, 1]} : vector<8x96xf32> to vector<8x32xf32>
    %73 = vector.extract_strided_slice %63 {offsets = [0, 96], sizes = [8, 32], strides = [1, 1]} : vector<8x128xf32> to vector<8x32xf32>
    %74 = math.tanh %73 : vector<8x32xf32>
    %75 = arith.mulf %71, %53 : vector<8x32xf32>
    %76 = arith.mulf %70, %74 : vector<8x32xf32>
    %77 = arith.addf %75, %76 : vector<8x32xf32>
    %78 = math.tanh %77 : vector<8x32xf32>
    %79 = arith.mulf %72, %78 : vector<8x32xf32>
    %80 = arith.index_cast %59 : i32 to index
    %c0_24 = arith.constant 0 : index
    %81 = vector.load %arg12[%80, %c0_24] : memref<64x32xf32, #tpu.memory_space<vmem>>, vector<8x32xf32>
    tpu.vector_store %arg12[%80, %c0_24], %79 {strides = array<i32>} : memref<64x32xf32, #tpu.memory_space<vmem>>, vector<8x32xf32>,
    %c3_i32 = arith.constant 3 : i32
    %c8_i32_25 = arith.constant 8 : i32
    %82 = arith.muli %c3_i32, %c8_i32_25 : i32
    %83 = tpu.assume_multiple %82, 8 : i32
    %84 = arith.index_cast %83 : i32 to index
    %c0_26 = arith.constant 0 : index
    %85 = vector.load %arg11[%84, %c0_26] : memref<64x128xf32, #tpu.memory_space<vmem>>, vector<8x128xf32>
    %cst_27 = arith.constant dense<0.000000e+00> : vector<8x128xf32>
    %86 = tpu.matmul %79, %7, %cst_27 {dimension_numbers = #tpu.dot_dimension_numbers<[1], [0], [0], [1], [0, 0, 1, 1], [], []>} : vector<8x32xf32>, vector<32x128xf32>, vector<8x128xf32> -> vector<8x128xf32>
    %87 = arith.addf %85, %86 : vector<8x128xf32>
    %88 = vector.extract_strided_slice %87 {offsets = [0, 0], sizes = [8, 96], strides = [1, 1]} : vector<8x128xf32> to vector<8x96xf32>
    %89 = arith.negf %88 : vector<8x96xf32>
    %90 = math.exp %89 : vector<8x96xf32>
    %cst_28 = arith.constant 1.000000e+00 : f32
    %91 = vector.broadcast %cst_28 : f32 to vector<8x96xf32>
    %92 = arith.addf %91, %90 : vector<8x96xf32>
    %93 = arith.divf %91, %92 : vector<8x96xf32>
    %94 = vector.extract_strided_slice %93 {offsets = [0, 0], sizes = [8, 32], strides = [1, 1]} : vector<8x96xf32> to vector<8x32xf32>
    %95 = vector.extract_strided_slice %93 {offsets = [0, 32], sizes = [8, 32], strides = [1, 1]} : vector<8x96xf32> to vector<8x32xf32>
    %96 = vector.extract_strided_slice %93 {offsets = [0, 64], sizes = [8, 32], strides = [1, 1]} : vector<8x96xf32> to vector<8x32xf32>
    %97 = vector.extract_strided_slice %87 {offsets = [0, 96], sizes = [8, 32], strides = [1, 1]} : vector<8x128xf32> to vector<8x32xf32>
    %98 = math.tanh %97 : vector<8x32xf32>
    %99 = arith.mulf %95, %77 : vector<8x32xf32>
    %100 = arith.mulf %94, %98 : vector<8x32xf32>
    %101 = arith.addf %99, %100 : vector<8x32xf32>
    %102 = math.tanh %101 : vector<8x32xf32>
    %103 = arith.mulf %96, %102 : vector<8x32xf32>
    %104 = arith.index_cast %83 : i32 to index
    %c0_29 = arith.constant 0 : index
    %105 = vector.load %arg12[%104, %c0_29] : memref<64x32xf32, #tpu.memory_space<vmem>>, vector<8x32xf32>
    tpu.vector_store %arg12[%104, %c0_29], %103 {strides = array<i32>} : memref<64x32xf32, #tpu.memory_space<vmem>>, vector<8x32xf32>,
    %c4_i32 = arith.constant 4 : i32
    %c8_i32_30 = arith.constant 8 : i32
    %106 = arith.muli %c4_i32, %c8_i32_30 : i32
    %107 = tpu.assume_multiple %106, 8 : i32
    %108 = arith.index_cast %107 : i32 to index
    %c0_31 = arith.constant 0 : index
    %109 = vector.load %arg11[%108, %c0_31] : memref<64x128xf32, #tpu.memory_space<vmem>>, vector<8x128xf32>
    %cst_32 = arith.constant dense<0.000000e+00> : vector<8x128xf32>
    %110 = tpu.matmul %103, %7, %cst_32 {dimension_numbers = #tpu.dot_dimension_numbers<[1], [0], [0], [1], [0, 0, 1, 1], [], []>} : vector<8x32xf32>, vector<32x128xf32>, vector<8x128xf32> -> vector<8x128xf32>
    %111 = arith.addf %109, %110 : vector<8x128xf32>
    %112 = vector.extract_strided_slice %111 {offsets = [0, 0], sizes = [8, 96], strides = [1, 1]} : vector<8x128xf32> to vector<8x96xf32>
    %113 = arith.negf %112 : vector<8x96xf32>
    %114 = math.exp %113 : vector<8x96xf32>
    %cst_33 = arith.constant 1.000000e+00 : f32
    %115 = vector.broadcast %cst_33 : f32 to vector<8x96xf32>
    %116 = arith.addf %115, %114 : vector<8x96xf32>
    %117 = arith.divf %115, %116 : vector<8x96xf32>
    %118 = vector.extract_strided_slice %117 {offsets = [0, 0], sizes = [8, 32], strides = [1, 1]} : vector<8x96xf32> to vector<8x32xf32>
    %119 = vector.extract_strided_slice %117 {offsets = [0, 32], sizes = [8, 32], strides = [1, 1]} : vector<8x96xf32> to vector<8x32xf32>
    %120 = vector.extract_strided_slice %117 {offsets = [0, 64], sizes = [8, 32], strides = [1, 1]} : vector<8x96xf32> to vector<8x32xf32>
    %121 = vector.extract_strided_slice %111 {offsets = [0, 96], sizes = [8, 32], strides = [1, 1]} : vector<8x128xf32> to vector<8x32xf32>
    %122 = math.tanh %121 : vector<8x32xf32>
    %123 = arith.mulf %119, %101 : vector<8x32xf32>
    %124 = arith.mulf %118, %122 : vector<8x32xf32>
    %125 = arith.addf %123, %124 : vector<8x32xf32>
    %126 = math.tanh %125 : vector<8x32xf32>
    %127 = arith.mulf %120, %126 : vector<8x32xf32>
    %128 = arith.index_cast %107 : i32 to index
    %c0_34 = arith.constant 0 : index
    %129 = vector.load %arg12[%128, %c0_34] : memref<64x32xf32, #tpu.memory_space<vmem>>, vector<8x32xf32>
    tpu.vector_store %arg12[%128, %c0_34], %127 {strides = array<i32>} : memref<64x32xf32, #tpu.memory_space<vmem>>, vector<8x32xf32>,
    %c5_i32 = arith.constant 5 : i32
    %c8_i32_35 = arith.constant 8 : i32
    %130 = arith.muli %c5_i32, %c8_i32_35 : i32
    %131 = tpu.assume_multiple %130, 8 : i32
    %132 = arith.index_cast %131 : i32 to index
    %c0_36 = arith.constant 0 : index
    %133 = vector.load %arg11[%132, %c0_36] : memref<64x128xf32, #tpu.memory_space<vmem>>, vector<8x128xf32>
    %cst_37 = arith.constant dense<0.000000e+00> : vector<8x128xf32>
    %134 = tpu.matmul %127, %7, %cst_37 {dimension_numbers = #tpu.dot_dimension_numbers<[1], [0], [0], [1], [0, 0, 1, 1], [], []>} : vector<8x32xf32>, vector<32x128xf32>, vector<8x128xf32> -> vector<8x128xf32>
    %135 = arith.addf %133, %134 : vector<8x128xf32>
    %136 = vector.extract_strided_slice %135 {offsets = [0, 0], sizes = [8, 96], strides = [1, 1]} : vector<8x128xf32> to vector<8x96xf32>
    %137 = arith.negf %136 : vector<8x96xf32>
    %138 = math.exp %137 : vector<8x96xf32>
    %cst_38 = arith.constant 1.000000e+00 : f32
    %139 = vector.broadcast %cst_38 : f32 to vector<8x96xf32>
    %140 = arith.addf %139, %138 : vector<8x96xf32>
    %141 = arith.divf %139, %140 : vector<8x96xf32>
    %142 = vector.extract_strided_slice %141 {offsets = [0, 0], sizes = [8, 32], strides = [1, 1]} : vector<8x96xf32> to vector<8x32xf32>
    %143 = vector.extract_strided_slice %141 {offsets = [0, 32], sizes = [8, 32], strides = [1, 1]} : vector<8x96xf32> to vector<8x32xf32>
    %144 = vector.extract_strided_slice %141 {offsets = [0, 64], sizes = [8, 32], strides = [1, 1]} : vector<8x96xf32> to vector<8x32xf32>
    %145 = vector.extract_strided_slice %135 {offsets = [0, 96], sizes = [8, 32], strides = [1, 1]} : vector<8x128xf32> to vector<8x32xf32>
    %146 = math.tanh %145 : vector<8x32xf32>
    %147 = arith.mulf %143, %125 : vector<8x32xf32>
    %148 = arith.mulf %142, %146 : vector<8x32xf32>
    %149 = arith.addf %147, %148 : vector<8x32xf32>
    %150 = math.tanh %149 : vector<8x32xf32>
    %151 = arith.mulf %144, %150 : vector<8x32xf32>
    %152 = arith.index_cast %131 : i32 to index
    %c0_39 = arith.constant 0 : index
    %153 = vector.load %arg12[%152, %c0_39] : memref<64x32xf32, #tpu.memory_space<vmem>>, vector<8x32xf32>
    tpu.vector_store %arg12[%152, %c0_39], %151 {strides = array<i32>} : memref<64x32xf32, #tpu.memory_space<vmem>>, vector<8x32xf32>,
    %c6_i32 = arith.constant 6 : i32
    %c8_i32_40 = arith.constant 8 : i32
    %154 = arith.muli %c6_i32, %c8_i32_40 : i32
    %155 = tpu.assume_multiple %154, 8 : i32
    %156 = arith.index_cast %155 : i32 to index
    %c0_41 = arith.constant 0 : index
    %157 = vector.load %arg11[%156, %c0_41] : memref<64x128xf32, #tpu.memory_space<vmem>>, vector<8x128xf32>
    %cst_42 = arith.constant dense<0.000000e+00> : vector<8x128xf32>
    %158 = tpu.matmul %151, %7, %cst_42 {dimension_numbers = #tpu.dot_dimension_numbers<[1], [0], [0], [1], [0, 0, 1, 1], [], []>} : vector<8x32xf32>, vector<32x128xf32>, vector<8x128xf32> -> vector<8x128xf32>
    %159 = arith.addf %157, %158 : vector<8x128xf32>
    %160 = vector.extract_strided_slice %159 {offsets = [0, 0], sizes = [8, 96], strides = [1, 1]} : vector<8x128xf32> to vector<8x96xf32>
    %161 = arith.negf %160 : vector<8x96xf32>
    %162 = math.exp %161 : vector<8x96xf32>
    %cst_43 = arith.constant 1.000000e+00 : f32
    %163 = vector.broadcast %cst_43 : f32 to vector<8x96xf32>
    %164 = arith.addf %163, %162 : vector<8x96xf32>
    %165 = arith.divf %163, %164 : vector<8x96xf32>
    %166 = vector.extract_strided_slice %165 {offsets = [0, 0], sizes = [8, 32], strides = [1, 1]} : vector<8x96xf32> to vector<8x32xf32>
    %167 = vector.extract_strided_slice %165 {offsets = [0, 32], sizes = [8, 32], strides = [1, 1]} : vector<8x96xf32> to vector<8x32xf32>
    %168 = vector.extract_strided_slice %165 {offsets = [0, 64], sizes = [8, 32], strides = [1, 1]} : vector<8x96xf32> to vector<8x32xf32>
    %169 = vector.extract_strided_slice %159 {offsets = [0, 96], sizes = [8, 32], strides = [1, 1]} : vector<8x128xf32> to vector<8x32xf32>
    %170 = math.tanh %169 : vector<8x32xf32>
    %171 = arith.mulf %167, %149 : vector<8x32xf32>
    %172 = arith.mulf %166, %170 : vector<8x32xf32>
    %173 = arith.addf %171, %172 : vector<8x32xf32>
    %174 = math.tanh %173 : vector<8x32xf32>
    %175 = arith.mulf %168, %174 : vector<8x32xf32>
    %176 = arith.index_cast %155 : i32 to index
    %c0_44 = arith.constant 0 : index
    %177 = vector.load %arg12[%176, %c0_44] : memref<64x32xf32, #tpu.memory_space<vmem>>, vector<8x32xf32>
    tpu.vector_store %arg12[%176, %c0_44], %175 {strides = array<i32>} : memref<64x32xf32, #tpu.memory_space<vmem>>, vector<8x32xf32>,
    %c7_i32 = arith.constant 7 : i32
    %c8_i32_45 = arith.constant 8 : i32
    %178 = arith.muli %c7_i32, %c8_i32_45 : i32
    %179 = tpu.assume_multiple %178, 8 : i32
    %180 = arith.index_cast %179 : i32 to index
    %c0_46 = arith.constant 0 : index
    %181 = vector.load %arg11[%180, %c0_46] : memref<64x128xf32, #tpu.memory_space<vmem>>, vector<8x128xf32>
    %cst_47 = arith.constant dense<0.000000e+00> : vector<8x128xf32>
    %182 = tpu.matmul %175, %7, %cst_47 {dimension_numbers = #tpu.dot_dimension_numbers<[1], [0], [0], [1], [0, 0, 1, 1], [], []>} : vector<8x32xf32>, vector<32x128xf32>, vector<8x128xf32> -> vector<8x128xf32>
    %183 = arith.addf %181, %182 : vector<8x128xf32>
    %184 = vector.extract_strided_slice %183 {offsets = [0, 0], sizes = [8, 96], strides = [1, 1]} : vector<8x128xf32> to vector<8x96xf32>
    %185 = arith.negf %184 : vector<8x96xf32>
    %186 = math.exp %185 : vector<8x96xf32>
    %cst_48 = arith.constant 1.000000e+00 : f32
    %187 = vector.broadcast %cst_48 : f32 to vector<8x96xf32>
    %188 = arith.addf %187, %186 : vector<8x96xf32>
    %189 = arith.divf %187, %188 : vector<8x96xf32>
    %190 = vector.extract_strided_slice %189 {offsets = [0, 0], sizes = [8, 32], strides = [1, 1]} : vector<8x96xf32> to vector<8x32xf32>
    %191 = vector.extract_strided_slice %189 {offsets = [0, 32], sizes = [8, 32], strides = [1, 1]} : vector<8x96xf32> to vector<8x32xf32>
    %192 = vector.extract_strided_slice %189 {offsets = [0, 64], sizes = [8, 32], strides = [1, 1]} : vector<8x96xf32> to vector<8x32xf32>
    %193 = vector.extract_strided_slice %183 {offsets = [0, 96], sizes = [8, 32], strides = [1, 1]} : vector<8x128xf32> to vector<8x32xf32>
    %194 = math.tanh %193 : vector<8x32xf32>
    %195 = arith.mulf %191, %173 : vector<8x32xf32>
    %196 = arith.mulf %190, %194 : vector<8x32xf32>
    %197 = arith.addf %195, %196 : vector<8x32xf32>
    %198 = math.tanh %197 : vector<8x32xf32>
    %199 = arith.mulf %192, %198 : vector<8x32xf32>
    %200 = arith.index_cast %179 : i32 to index
    %c0_49 = arith.constant 0 : index
    %201 = vector.load %arg12[%200, %c0_49] : memref<64x32xf32, #tpu.memory_space<vmem>>, vector<8x32xf32>
    tpu.vector_store %arg12[%200, %c0_49], %199 {strides = array<i32>} : memref<64x32xf32, #tpu.memory_space<vmem>>, vector<8x32xf32>,
    %c8_i32_50 = arith.constant 8 : i32
    %c0_51 = arith.constant 0 : index
    %c0_52 = arith.constant 0 : index
    %202 = vector.load %arg12[%c0_51, %c0_52] : memref<64x32xf32, #tpu.memory_space<vmem>>, vector<64x32xf32>
    %c0_53 = arith.constant 0 : index
    %c0_54 = arith.constant 0 : index
    %203 = vector.load %arg5[%c0_53, %c0_54] : memref<32x128xf32, #tpu.memory_space<vmem>>, vector<32x128xf32>
    %cst_55 = arith.constant dense<0.000000e+00> : vector<64x128xf32>
    %204 = tpu.matmul %202, %203, %cst_55 {dimension_numbers = #tpu.dot_dimension_numbers<[1], [0], [0], [1], [0, 0, 1, 1], [], []>} : vector<64x32xf32>, vector<32x128xf32>, vector<64x128xf32> -> vector<64x128xf32>
    %c0_56 = arith.constant 0 : index
    %c0_57 = arith.constant 0 : index
    %205 = vector.load %arg7[%c0_56, %c0_57] : memref<1x128xf32, #tpu.memory_space<vmem>>, vector<1x128xf32>
    %206 = vector.broadcast %205 : vector<1x128xf32> to vector<64x128xf32>
    %207 = arith.addf %204, %206 : vector<64x128xf32>
    %c0_58 = arith.constant 0 : index
    %c0_59 = arith.constant 0 : index
    %208 = vector.load %arg11[%c0_58, %c0_59] : memref<64x128xf32, #tpu.memory_space<vmem>>, vector<64x128xf32>
    tpu.vector_store %arg11[%c0_58, %c0_59], %207 {strides = array<i32>} : memref<64x128xf32, #tpu.memory_space<vmem>>, vector<64x128xf32>,
    %c0_60 = arith.constant 0 : index
    %c0_61 = arith.constant 0 : index
    %209 = vector.load %arg6[%c0_60, %c0_61] : memref<32x128xf32, #tpu.memory_space<vmem>>, vector<32x128xf32>
    %cst_62 = arith.constant 0.000000e+00 : f32
    %210 = vector.broadcast %cst_62 : f32 to vector<8x32xf32>
    %cst_63 = arith.constant 0.000000e+00 : f32
    %211 = vector.broadcast %cst_63 : f32 to vector<8x32xf32>
    %c0_i32_64 = arith.constant 0 : i32
    %c8_i32_65 = arith.constant 8 : i32
    %212 = arith.muli %c0_i32_64, %c8_i32_65 : i32
    %213 = tpu.assume_multiple %212, 8 : i32
    %214 = arith.index_cast %213 : i32 to index
    %c0_66 = arith.constant 0 : index
    %215 = vector.load %arg11[%214, %c0_66] : memref<64x128xf32, #tpu.memory_space<vmem>>, vector<8x128xf32>
    %cst_67 = arith.constant dense<0.000000e+00> : vector<8x128xf32>
    %216 = tpu.matmul %210, %209, %cst_67 {dimension_numbers = #tpu.dot_dimension_numbers<[1], [0], [0], [1], [0, 0, 1, 1], [], []>} : vector<8x32xf32>, vector<32x128xf32>, vector<8x128xf32> -> vector<8x128xf32>
    %217 = arith.addf %215, %216 : vector<8x128xf32>
    %218 = vector.extract_strided_slice %217 {offsets = [0, 0], sizes = [8, 96], strides = [1, 1]} : vector<8x128xf32> to vector<8x96xf32>
    %219 = arith.negf %218 : vector<8x96xf32>
    %220 = math.exp %219 : vector<8x96xf32>
    %cst_68 = arith.constant 1.000000e+00 : f32
    %221 = vector.broadcast %cst_68 : f32 to vector<8x96xf32>
    %222 = arith.addf %221, %220 : vector<8x96xf32>
    %223 = arith.divf %221, %222 : vector<8x96xf32>
    %224 = vector.extract_strided_slice %223 {offsets = [0, 0], sizes = [8, 32], strides = [1, 1]} : vector<8x96xf32> to vector<8x32xf32>
    %225 = vector.extract_strided_slice %223 {offsets = [0, 32], sizes = [8, 32], strides = [1, 1]} : vector<8x96xf32> to vector<8x32xf32>
    %226 = vector.extract_strided_slice %223 {offsets = [0, 64], sizes = [8, 32], strides = [1, 1]} : vector<8x96xf32> to vector<8x32xf32>
    %227 = vector.extract_strided_slice %217 {offsets = [0, 96], sizes = [8, 32], strides = [1, 1]} : vector<8x128xf32> to vector<8x32xf32>
    %228 = math.tanh %227 : vector<8x32xf32>
    %229 = arith.mulf %225, %211 : vector<8x32xf32>
    %230 = arith.mulf %224, %228 : vector<8x32xf32>
    %231 = arith.addf %229, %230 : vector<8x32xf32>
    %232 = math.tanh %231 : vector<8x32xf32>
    %233 = arith.mulf %226, %232 : vector<8x32xf32>
    %c1_i32_69 = arith.constant 1 : i32
    %c8_i32_70 = arith.constant 8 : i32
    %234 = arith.muli %c1_i32_69, %c8_i32_70 : i32
    %235 = tpu.assume_multiple %234, 8 : i32
    %236 = arith.index_cast %235 : i32 to index
    %c0_71 = arith.constant 0 : index
    %237 = vector.load %arg11[%236, %c0_71] : memref<64x128xf32, #tpu.memory_space<vmem>>, vector<8x128xf32>
    %cst_72 = arith.constant dense<0.000000e+00> : vector<8x128xf32>
    %238 = tpu.matmul %233, %209, %cst_72 {dimension_numbers = #tpu.dot_dimension_numbers<[1], [0], [0], [1], [0, 0, 1, 1], [], []>} : vector<8x32xf32>, vector<32x128xf32>, vector<8x128xf32> -> vector<8x128xf32>
    %239 = arith.addf %237, %238 : vector<8x128xf32>
    %240 = vector.extract_strided_slice %239 {offsets = [0, 0], sizes = [8, 96], strides = [1, 1]} : vector<8x128xf32> to vector<8x96xf32>
    %241 = arith.negf %240 : vector<8x96xf32>
    %242 = math.exp %241 : vector<8x96xf32>
    %cst_73 = arith.constant 1.000000e+00 : f32
    %243 = vector.broadcast %cst_73 : f32 to vector<8x96xf32>
    %244 = arith.addf %243, %242 : vector<8x96xf32>
    %245 = arith.divf %243, %244 : vector<8x96xf32>
    %246 = vector.extract_strided_slice %245 {offsets = [0, 0], sizes = [8, 32], strides = [1, 1]} : vector<8x96xf32> to vector<8x32xf32>
    %247 = vector.extract_strided_slice %245 {offsets = [0, 32], sizes = [8, 32], strides = [1, 1]} : vector<8x96xf32> to vector<8x32xf32>
    %248 = vector.extract_strided_slice %245 {offsets = [0, 64], sizes = [8, 32], strides = [1, 1]} : vector<8x96xf32> to vector<8x32xf32>
    %249 = vector.extract_strided_slice %239 {offsets = [0, 96], sizes = [8, 32], strides = [1, 1]} : vector<8x128xf32> to vector<8x32xf32>
    %250 = math.tanh %249 : vector<8x32xf32>
    %251 = arith.mulf %247, %231 : vector<8x32xf32>
    %252 = arith.mulf %246, %250 : vector<8x32xf32>
    %253 = arith.addf %251, %252 : vector<8x32xf32>
    %254 = math.tanh %253 : vector<8x32xf32>
    %255 = arith.mulf %248, %254 : vector<8x32xf32>
    %c2_i32_74 = arith.constant 2 : i32
    %c8_i32_75 = arith.constant 8 : i32
    %256 = arith.muli %c2_i32_74, %c8_i32_75 : i32
    %257 = tpu.assume_multiple %256, 8 : i32
    %258 = arith.index_cast %257 : i32 to index
    %c0_76 = arith.constant 0 : index
    %259 = vector.load %arg11[%258, %c0_76] : memref<64x128xf32, #tpu.memory_space<vmem>>, vector<8x128xf32>
    %cst_77 = arith.constant dense<0.000000e+00> : vector<8x128xf32>
    %260 = tpu.matmul %255, %209, %cst_77 {dimension_numbers = #tpu.dot_dimension_numbers<[1], [0], [0], [1], [0, 0, 1, 1], [], []>} : vector<8x32xf32>, vector<32x128xf32>, vector<8x128xf32> -> vector<8x128xf32>
    %261 = arith.addf %259, %260 : vector<8x128xf32>
    %262 = vector.extract_strided_slice %261 {offsets = [0, 0], sizes = [8, 96], strides = [1, 1]} : vector<8x128xf32> to vector<8x96xf32>
    %263 = arith.negf %262 : vector<8x96xf32>
    %264 = math.exp %263 : vector<8x96xf32>
    %cst_78 = arith.constant 1.000000e+00 : f32
    %265 = vector.broadcast %cst_78 : f32 to vector<8x96xf32>
    %266 = arith.addf %265, %264 : vector<8x96xf32>
    %267 = arith.divf %265, %266 : vector<8x96xf32>
    %268 = vector.extract_strided_slice %267 {offsets = [0, 0], sizes = [8, 32], strides = [1, 1]} : vector<8x96xf32> to vector<8x32xf32>
    %269 = vector.extract_strided_slice %267 {offsets = [0, 32], sizes = [8, 32], strides = [1, 1]} : vector<8x96xf32> to vector<8x32xf32>
    %270 = vector.extract_strided_slice %267 {offsets = [0, 64], sizes = [8, 32], strides = [1, 1]} : vector<8x96xf32> to vector<8x32xf32>
    %271 = vector.extract_strided_slice %261 {offsets = [0, 96], sizes = [8, 32], strides = [1, 1]} : vector<8x128xf32> to vector<8x32xf32>
    %272 = math.tanh %271 : vector<8x32xf32>
    %273 = arith.mulf %269, %253 : vector<8x32xf32>
    %274 = arith.mulf %268, %272 : vector<8x32xf32>
    %275 = arith.addf %273, %274 : vector<8x32xf32>
    %276 = math.tanh %275 : vector<8x32xf32>
    %277 = arith.mulf %270, %276 : vector<8x32xf32>
    %c3_i32_79 = arith.constant 3 : i32
    %c8_i32_80 = arith.constant 8 : i32
    %278 = arith.muli %c3_i32_79, %c8_i32_80 : i32
    %279 = tpu.assume_multiple %278, 8 : i32
    %280 = arith.index_cast %279 : i32 to index
    %c0_81 = arith.constant 0 : index
    %281 = vector.load %arg11[%280, %c0_81] : memref<64x128xf32, #tpu.memory_space<vmem>>, vector<8x128xf32>
    %cst_82 = arith.constant dense<0.000000e+00> : vector<8x128xf32>
    %282 = tpu.matmul %277, %209, %cst_82 {dimension_numbers = #tpu.dot_dimension_numbers<[1], [0], [0], [1], [0, 0, 1, 1], [], []>} : vector<8x32xf32>, vector<32x128xf32>, vector<8x128xf32> -> vector<8x128xf32>
    %283 = arith.addf %281, %282 : vector<8x128xf32>
    %284 = vector.extract_strided_slice %283 {offsets = [0, 0], sizes = [8, 96], strides = [1, 1]} : vector<8x128xf32> to vector<8x96xf32>
    %285 = arith.negf %284 : vector<8x96xf32>
    %286 = math.exp %285 : vector<8x96xf32>
    %cst_83 = arith.constant 1.000000e+00 : f32
    %287 = vector.broadcast %cst_83 : f32 to vector<8x96xf32>
    %288 = arith.addf %287, %286 : vector<8x96xf32>
    %289 = arith.divf %287, %288 : vector<8x96xf32>
    %290 = vector.extract_strided_slice %289 {offsets = [0, 0], sizes = [8, 32], strides = [1, 1]} : vector<8x96xf32> to vector<8x32xf32>
    %291 = vector.extract_strided_slice %289 {offsets = [0, 32], sizes = [8, 32], strides = [1, 1]} : vector<8x96xf32> to vector<8x32xf32>
    %292 = vector.extract_strided_slice %289 {offsets = [0, 64], sizes = [8, 32], strides = [1, 1]} : vector<8x96xf32> to vector<8x32xf32>
    %293 = vector.extract_strided_slice %283 {offsets = [0, 96], sizes = [8, 32], strides = [1, 1]} : vector<8x128xf32> to vector<8x32xf32>
    %294 = math.tanh %293 : vector<8x32xf32>
    %295 = arith.mulf %291, %275 : vector<8x32xf32>
    %296 = arith.mulf %290, %294 : vector<8x32xf32>
    %297 = arith.addf %295, %296 : vector<8x32xf32>
    %298 = math.tanh %297 : vector<8x32xf32>
    %299 = arith.mulf %292, %298 : vector<8x32xf32>
    %c4_i32_84 = arith.constant 4 : i32
    %c8_i32_85 = arith.constant 8 : i32
    %300 = arith.muli %c4_i32_84, %c8_i32_85 : i32
    %301 = tpu.assume_multiple %300, 8 : i32
    %302 = arith.index_cast %301 : i32 to index
    %c0_86 = arith.constant 0 : index
    %303 = vector.load %arg11[%302, %c0_86] : memref<64x128xf32, #tpu.memory_space<vmem>>, vector<8x128xf32>
    %cst_87 = arith.constant dense<0.000000e+00> : vector<8x128xf32>
    %304 = tpu.matmul %299, %209, %cst_87 {dimension_numbers = #tpu.dot_dimension_numbers<[1], [0], [0], [1], [0, 0, 1, 1], [], []>} : vector<8x32xf32>, vector<32x128xf32>, vector<8x128xf32> -> vector<8x128xf32>
    %305 = arith.addf %303, %304 : vector<8x128xf32>
    %306 = vector.extract_strided_slice %305 {offsets = [0, 0], sizes = [8, 96], strides = [1, 1]} : vector<8x128xf32> to vector<8x96xf32>
    %307 = arith.negf %306 : vector<8x96xf32>
    %308 = math.exp %307 : vector<8x96xf32>
    %cst_88 = arith.constant 1.000000e+00 : f32
    %309 = vector.broadcast %cst_88 : f32 to vector<8x96xf32>
    %310 = arith.addf %309, %308 : vector<8x96xf32>
    %311 = arith.divf %309, %310 : vector<8x96xf32>
    %312 = vector.extract_strided_slice %311 {offsets = [0, 0], sizes = [8, 32], strides = [1, 1]} : vector<8x96xf32> to vector<8x32xf32>
    %313 = vector.extract_strided_slice %311 {offsets = [0, 32], sizes = [8, 32], strides = [1, 1]} : vector<8x96xf32> to vector<8x32xf32>
    %314 = vector.extract_strided_slice %311 {offsets = [0, 64], sizes = [8, 32], strides = [1, 1]} : vector<8x96xf32> to vector<8x32xf32>
    %315 = vector.extract_strided_slice %305 {offsets = [0, 96], sizes = [8, 32], strides = [1, 1]} : vector<8x128xf32> to vector<8x32xf32>
    %316 = math.tanh %315 : vector<8x32xf32>
    %317 = arith.mulf %313, %297 : vector<8x32xf32>
    %318 = arith.mulf %312, %316 : vector<8x32xf32>
    %319 = arith.addf %317, %318 : vector<8x32xf32>
    %320 = math.tanh %319 : vector<8x32xf32>
    %321 = arith.mulf %314, %320 : vector<8x32xf32>
    %c5_i32_89 = arith.constant 5 : i32
    %c8_i32_90 = arith.constant 8 : i32
    %322 = arith.muli %c5_i32_89, %c8_i32_90 : i32
    %323 = tpu.assume_multiple %322, 8 : i32
    %324 = arith.index_cast %323 : i32 to index
    %c0_91 = arith.constant 0 : index
    %325 = vector.load %arg11[%324, %c0_91] : memref<64x128xf32, #tpu.memory_space<vmem>>, vector<8x128xf32>
    %cst_92 = arith.constant dense<0.000000e+00> : vector<8x128xf32>
    %326 = tpu.matmul %321, %209, %cst_92 {dimension_numbers = #tpu.dot_dimension_numbers<[1], [0], [0], [1], [0, 0, 1, 1], [], []>} : vector<8x32xf32>, vector<32x128xf32>, vector<8x128xf32> -> vector<8x128xf32>
    %327 = arith.addf %325, %326 : vector<8x128xf32>
    %328 = vector.extract_strided_slice %327 {offsets = [0, 0], sizes = [8, 96], strides = [1, 1]} : vector<8x128xf32> to vector<8x96xf32>
    %329 = arith.negf %328 : vector<8x96xf32>
    %330 = math.exp %329 : vector<8x96xf32>
    %cst_93 = arith.constant 1.000000e+00 : f32
    %331 = vector.broadcast %cst_93 : f32 to vector<8x96xf32>
    %332 = arith.addf %331, %330 : vector<8x96xf32>
    %333 = arith.divf %331, %332 : vector<8x96xf32>
    %334 = vector.extract_strided_slice %333 {offsets = [0, 0], sizes = [8, 32], strides = [1, 1]} : vector<8x96xf32> to vector<8x32xf32>
    %335 = vector.extract_strided_slice %333 {offsets = [0, 32], sizes = [8, 32], strides = [1, 1]} : vector<8x96xf32> to vector<8x32xf32>
    %336 = vector.extract_strided_slice %333 {offsets = [0, 64], sizes = [8, 32], strides = [1, 1]} : vector<8x96xf32> to vector<8x32xf32>
    %337 = vector.extract_strided_slice %327 {offsets = [0, 96], sizes = [8, 32], strides = [1, 1]} : vector<8x128xf32> to vector<8x32xf32>
    %338 = math.tanh %337 : vector<8x32xf32>
    %339 = arith.mulf %335, %319 : vector<8x32xf32>
    %340 = arith.mulf %334, %338 : vector<8x32xf32>
    %341 = arith.addf %339, %340 : vector<8x32xf32>
    %342 = math.tanh %341 : vector<8x32xf32>
    %343 = arith.mulf %336, %342 : vector<8x32xf32>
    %c6_i32_94 = arith.constant 6 : i32
    %c8_i32_95 = arith.constant 8 : i32
    %344 = arith.muli %c6_i32_94, %c8_i32_95 : i32
    %345 = tpu.assume_multiple %344, 8 : i32
    %346 = arith.index_cast %345 : i32 to index
    %c0_96 = arith.constant 0 : index
    %347 = vector.load %arg11[%346, %c0_96] : memref<64x128xf32, #tpu.memory_space<vmem>>, vector<8x128xf32>
    %cst_97 = arith.constant dense<0.000000e+00> : vector<8x128xf32>
    %348 = tpu.matmul %343, %209, %cst_97 {dimension_numbers = #tpu.dot_dimension_numbers<[1], [0], [0], [1], [0, 0, 1, 1], [], []>} : vector<8x32xf32>, vector<32x128xf32>, vector<8x128xf32> -> vector<8x128xf32>
    %349 = arith.addf %347, %348 : vector<8x128xf32>
    %350 = vector.extract_strided_slice %349 {offsets = [0, 0], sizes = [8, 96], strides = [1, 1]} : vector<8x128xf32> to vector<8x96xf32>
    %351 = arith.negf %350 : vector<8x96xf32>
    %352 = math.exp %351 : vector<8x96xf32>
    %cst_98 = arith.constant 1.000000e+00 : f32
    %353 = vector.broadcast %cst_98 : f32 to vector<8x96xf32>
    %354 = arith.addf %353, %352 : vector<8x96xf32>
    %355 = arith.divf %353, %354 : vector<8x96xf32>
    %356 = vector.extract_strided_slice %355 {offsets = [0, 0], sizes = [8, 32], strides = [1, 1]} : vector<8x96xf32> to vector<8x32xf32>
    %357 = vector.extract_strided_slice %355 {offsets = [0, 32], sizes = [8, 32], strides = [1, 1]} : vector<8x96xf32> to vector<8x32xf32>
    %358 = vector.extract_strided_slice %355 {offsets = [0, 64], sizes = [8, 32], strides = [1, 1]} : vector<8x96xf32> to vector<8x32xf32>
    %359 = vector.extract_strided_slice %349 {offsets = [0, 96], sizes = [8, 32], strides = [1, 1]} : vector<8x128xf32> to vector<8x32xf32>
    %360 = math.tanh %359 : vector<8x32xf32>
    %361 = arith.mulf %357, %341 : vector<8x32xf32>
    %362 = arith.mulf %356, %360 : vector<8x32xf32>
    %363 = arith.addf %361, %362 : vector<8x32xf32>
    %364 = math.tanh %363 : vector<8x32xf32>
    %365 = arith.mulf %358, %364 : vector<8x32xf32>
    %c7_i32_99 = arith.constant 7 : i32
    %c8_i32_100 = arith.constant 8 : i32
    %366 = arith.muli %c7_i32_99, %c8_i32_100 : i32
    %367 = tpu.assume_multiple %366, 8 : i32
    %368 = arith.index_cast %367 : i32 to index
    %c0_101 = arith.constant 0 : index
    %369 = vector.load %arg11[%368, %c0_101] : memref<64x128xf32, #tpu.memory_space<vmem>>, vector<8x128xf32>
    %cst_102 = arith.constant dense<0.000000e+00> : vector<8x128xf32>
    %370 = tpu.matmul %365, %209, %cst_102 {dimension_numbers = #tpu.dot_dimension_numbers<[1], [0], [0], [1], [0, 0, 1, 1], [], []>} : vector<8x32xf32>, vector<32x128xf32>, vector<8x128xf32> -> vector<8x128xf32>
    %371 = arith.addf %369, %370 : vector<8x128xf32>
    %372 = vector.extract_strided_slice %371 {offsets = [0, 0], sizes = [8, 96], strides = [1, 1]} : vector<8x128xf32> to vector<8x96xf32>
    %373 = arith.negf %372 : vector<8x96xf32>
    %374 = math.exp %373 : vector<8x96xf32>
    %cst_103 = arith.constant 1.000000e+00 : f32
    %375 = vector.broadcast %cst_103 : f32 to vector<8x96xf32>
    %376 = arith.addf %375, %374 : vector<8x96xf32>
    %377 = arith.divf %375, %376 : vector<8x96xf32>
    %378 = vector.extract_strided_slice %377 {offsets = [0, 0], sizes = [8, 32], strides = [1, 1]} : vector<8x96xf32> to vector<8x32xf32>
    %379 = vector.extract_strided_slice %377 {offsets = [0, 32], sizes = [8, 32], strides = [1, 1]} : vector<8x96xf32> to vector<8x32xf32>
    %380 = vector.extract_strided_slice %377 {offsets = [0, 64], sizes = [8, 32], strides = [1, 1]} : vector<8x96xf32> to vector<8x32xf32>
    %381 = vector.extract_strided_slice %371 {offsets = [0, 96], sizes = [8, 32], strides = [1, 1]} : vector<8x128xf32> to vector<8x32xf32>
    %382 = math.tanh %381 : vector<8x32xf32>
    %383 = arith.mulf %379, %363 : vector<8x32xf32>
    %384 = arith.mulf %378, %382 : vector<8x32xf32>
    %385 = arith.addf %383, %384 : vector<8x32xf32>
    %386 = math.tanh %385 : vector<8x32xf32>
    %387 = arith.mulf %380, %386 : vector<8x32xf32>
    %c8_i32_104 = arith.constant 8 : i32
    %cst_105 = arith.constant 0.000000e+00 : f32
    %388 = vector.broadcast %cst_105 : f32 to vector<8x32xf32>
    %389 = arith.maximumf %387, %388 : vector<8x32xf32>
    %c0_106 = arith.constant 0 : index
    %c0_107 = arith.constant 0 : index
    %390 = vector.load %arg8[%c0_106, %c0_107] : memref<32x128xf32, #tpu.memory_space<vmem>>, vector<32x128xf32>
    %cst_108 = arith.constant dense<0.000000e+00> : vector<8x128xf32>
    %391 = tpu.matmul %389, %390, %cst_108 {dimension_numbers = #tpu.dot_dimension_numbers<[1], [0], [0], [1], [0, 0, 1, 1], [], []>} : vector<8x32xf32>, vector<32x128xf32>, vector<8x128xf32> -> vector<8x128xf32>
    %c0_109 = arith.constant 0 : index
    %c0_110 = arith.constant 0 : index
    %392 = vector.load %arg9[%c0_109, %c0_110] : memref<1x128xf32, #tpu.memory_space<vmem>>, vector<1x128xf32>
    %393 = vector.broadcast %392 : vector<1x128xf32> to vector<8x128xf32>
    %394 = arith.addf %391, %393 : vector<8x128xf32>
    %c0_111 = arith.constant 0 : index
    %c0_112 = arith.constant 0 : index
    %395 = vector.load %arg10[%c0_111, %c0_112] : memref<8x128xf32, #tpu.memory_space<vmem>>, vector<8x128xf32>
    tpu.vector_store %arg10[%c0_111, %c0_112], %394 {strides = array<i32>} : memref<8x128xf32, #tpu.memory_space<vmem>>, vector<8x128xf32>,
    return
  }
  func.func @transform_0(%arg0: i32) -> (i32, i32) {
    %c0_i32 = arith.constant 0 : i32
    %c0_i32_0 = arith.constant 0 : i32
    return %arg0, %c0_i32 : i32, i32
  }
  func.func @transform_1(%arg0: i32) -> (i32, i32) {
    %c0_i32 = arith.constant 0 : i32
    %c0_i32_0 = arith.constant 0 : i32
    %c0_i32_1 = arith.constant 0 : i32
    return %c0_i32, %c0_i32_0 : i32, i32
  }
  func.func @transform_2(%arg0: i32) -> (i32, i32) {
    %c0_i32 = arith.constant 0 : i32
    %c0_i32_0 = arith.constant 0 : i32
    %c0_i32_1 = arith.constant 0 : i32
    return %c0_i32, %c0_i32_0 : i32, i32
  }
  func.func @transform_3(%arg0: i32) -> (i32, i32) {
    %c0_i32 = arith.constant 0 : i32
    %c0_i32_0 = arith.constant 0 : i32
    %c0_i32_1 = arith.constant 0 : i32
    return %c0_i32, %c0_i32_0 : i32, i32
  }
  func.func @transform_4(%arg0: i32) -> (i32, i32) {
    %c0_i32 = arith.constant 0 : i32
    %c0_i32_0 = arith.constant 0 : i32
    %c0_i32_1 = arith.constant 0 : i32
    return %c0_i32, %c0_i32_0 : i32, i32
  }
  func.func @transform_5(%arg0: i32) -> (i32, i32) {
    %c0_i32 = arith.constant 0 : i32
    %c0_i32_0 = arith.constant 0 : i32
    %c0_i32_1 = arith.constant 0 : i32
    return %c0_i32, %c0_i32_0 : i32, i32
  }
  func.func @transform_6(%arg0: i32) -> (i32, i32) {
    %c0_i32 = arith.constant 0 : i32
    %c0_i32_0 = arith.constant 0 : i32
    %c0_i32_1 = arith.constant 0 : i32
    return %c0_i32, %c0_i32_0 : i32, i32
  }
  func.func @transform_7(%arg0: i32) -> (i32, i32) {
    %c0_i32 = arith.constant 0 : i32
    %c0_i32_0 = arith.constant 0 : i32
    %c0_i32_1 = arith.constant 0 : i32
    return %c0_i32, %c0_i32_0 : i32, i32
  }
  func.func @transform_8(%arg0: i32) -> (i32, i32) {
    %c0_i32 = arith.constant 0 : i32
    %c0_i32_0 = arith.constant 0 : i32
    %c0_i32_1 = arith.constant 0 : i32
    return %c0_i32, %c0_i32_0 : i32, i32
  }
  func.func @transform_9(%arg0: i32) -> (i32, i32) {
    %c0_i32 = arith.constant 0 : i32
    %c0_i32_0 = arith.constant 0 : i32
    return %arg0, %c0_i32 : i32, i32
  }
}

</mosaic_0001>

<llo_original>
// kernel: tpu_custom_call.1
$region0: #{tpu_custom_call.1}
  #allocation0 [shape = 'u32[]', space=smem, size = 0x4, offset = 0x4, fixed_abs, tag = 'smem constant byte address 0x4 - core index']
  #allocation1 [shape = 'u32[72,128]{1,0:T(1,128)}', space=vmem, size = 0x9000, scoped, tag = 'internal scratch']
  #allocation2 [shape = 'f32[64,128]{1,0:T(8,128)}', space=vmem, size = 0x8000, scoped, tag = 'scratch operand']
  #allocation3 [shape = 'f32[64,32]{1,0:T(8,128)}', space=vmem, size = 0x8000, scoped, tag = 'scratch operand']
  %s0 = inlined_call_operand.vmem [shape: f32[64,16], index: 0, kind: input, shape index: {}]
  %s1 = inlined_call_operand.vmem [shape: f32[16,128], index: 1, kind: input, shape index: {}]
  %s2 = inlined_call_operand.vmem [shape: f32[32,128], index: 2, kind: input, shape index: {}]
  %s3 = inlined_call_operand.vmem [shape: f32[1,128], index: 3, kind: input, shape index: {}]
  %s4 = inlined_call_operand.vmem [shape: f32[32,128], index: 4, kind: input, shape index: {}]
  %s5 = inlined_call_operand.hbm [shape: f32[32,128], index: 5, kind: input, shape index: {}]
  %s6 = inlined_call_operand.vmem [shape: f32[1,128], index: 6, kind: input, shape index: {}]
  %s7 = inlined_call_operand.hbm [shape: f32[32,128], index: 7, kind: input, shape index: {}]
  %s8 = inlined_call_operand.vmem [shape: f32[1,128], index: 8, kind: input, shape index: {}]
  %s9 = inlined_call_operand.hbm [shape: f32[8,128], index: 9, kind: output, shape index: {}]
  %s10 = sld [smem:[#allocation0]]
  $region54: #{tpu_custom_call.1} parent=0
    _
  %s12 = ssub.s32 1, %s10
  %s13 = scalar_select 0, %s12, %s10
  $region1: #{tpu_custom_call.1} parent=0
    #allocation4 [shape = 'u8[16384]{0}', space=vmem, size = 0x4000, scoped, tag = 'input window, operand 5, single buffered']
    #allocation5 [shape = 's32[1]{0}', space=sflag, size = 0x4, scoped, tag = 'scoped memory for tpu_custom_call.1']
    #allocation6 [shape = 's32[1]{0}', space=sflag, size = 0x4, scoped, tag = 'scoped memory for tpu_custom_call.1']
    #allocation7 [shape = 'u8[16384]{0}', space=vmem, size = 0x4000, scoped, tag = 'input window, operand 7, single buffered']
    #allocation8 [shape = 's32[1]{0}', space=sflag, size = 0x4, scoped, tag = 'scoped memory for tpu_custom_call.1']
    #allocation9 [shape = 'u8[4096]{0}', space=vmem, size = 0x1000, scoped, tag = 'output window, operand 0, single buffered']
    %14 = vsyncpa [#allocation5], 0
    %15 = vsyncpa [#allocation8], 0
    %16 = vsyncpa [#allocation6], 0
    // Predicated region
    $region2: #{tpu_custom_call.1} parent=1 // pred_check
      _
    $region3: #{tpu_custom_call.1} parent=1 // pred_check_branch
      %18 = sbr.rel (0) target = $region5
    $region4: #{tpu_custom_call.1} parent=1 // pred_region
      _
    $region5: #{tpu_custom_call.1} parent=1 // pred_fallthru
      _
    // Predicated region
    $region6: #{tpu_custom_call.1} parent=1 // pred_check
      _
    $region7: #{tpu_custom_call.1} parent=1 // pred_check_branch
      %20 = sbr.rel (0) target = $region9
    $region8: #{tpu_custom_call.1} parent=1 // pred_region
      _
    $region9: #{tpu_custom_call.1} parent=1 // pred_fallthru
      _
    // Predicated region
    $region10: #{tpu_custom_call.1} parent=1 // pred_check
      _
    $region11: #{tpu_custom_call.1} parent=1 // pred_check_branch
      %22 = sbr.rel (0) target = $region13
    $region12: #{tpu_custom_call.1} parent=1 // pred_region
      _
    $region13: #{tpu_custom_call.1} parent=1 // pred_fallthru
      _
    // Predicated region
    $region14: #{tpu_custom_call.1} parent=1 // pred_check
      _
    $region15: #{tpu_custom_call.1} parent=1 // pred_check_branch
      %24 = sbr.rel (0) target = $region17
    $region16: #{tpu_custom_call.1} parent=1 // pred_region
      _
    $region17: #{tpu_custom_call.1} parent=1 // pred_fallthru
      _
    // Predicated region
    $region18: #{tpu_custom_call.1} parent=1 // pred_check
      _
    $region19: #{tpu_custom_call.1} parent=1 // pred_check_branch
      %26 = sbr.rel (0) target = $region21
    $region20: #{tpu_custom_call.1} parent=1 // pred_region
      _
    $region21: #{tpu_custom_call.1} parent=1 // pred_fallthru
      _
    // Predicated region
    $region22: #{tpu_custom_call.1} parent=1 // pred_check
      _
    $region23: #{tpu_custom_call.1} parent=1 // pred_check_branch
      %28 = sbr.rel (0) target = $region25
    $region24: #{tpu_custom_call.1} parent=1 // pred_region
      %30 = vsyncadd [#allocation5], 0
      %s31 = sshll.u32 %s5, 4
      %s32 = int_to_ptr.hbm [resolvable:$true] %s31
      %s33 = sshll.u32 [#allocation4], 4
      %s34 = int_to_ptr.vmem [resolvable:$true] %s33
      %39 = dma.hbm_to_vmem [thread:$0]  %s32, 512, %s34, [#allocation5], 128, 128, 8
    $region25: #{tpu_custom_call.1} parent=1 // pred_fallthru
      _
    // Predicated region
    $region26: #{tpu_custom_call.1} parent=1 // pred_check
      _
    $region27: #{tpu_custom_call.1} parent=1 // pred_check_branch
      %41 = sbr.rel (0) target = $region29
    $region28: #{tpu_custom_call.1} parent=1 // pred_region
      _
    $region29: #{tpu_custom_call.1} parent=1 // pred_fallthru
      _
    // Predicated region
    $region30: #{tpu_custom_call.1} parent=1 // pred_check
      _
    $region31: #{tpu_custom_call.1} parent=1 // pred_check_branch
      %43 = sbr.rel (0) target = $region33
    $region32: #{tpu_custom_call.1} parent=1 // pred_region
      %45 = vsyncadd [#allocation8], 0
      %s46 = sshll.u32 %s7, 4
      %s47 = int_to_ptr.hbm [resolvable:$true] %s46
      %s48 = sshll.u32 [#allocation7], 4
      %s49 = int_to_ptr.vmem [resolvable:$true] %s48
      %54 = dma.hbm_to_vmem [thread:$0]  %s47, 512, %s49, [#allocation8], 128, 128, 8
    $region33: #{tpu_custom_call.1} parent=1 // pred_fallthru
      _
    // Predicated region
    $region34: #{tpu_custom_call.1} parent=1 // pred_check
      _
    $region35: #{tpu_custom_call.1} parent=1 // pred_check_branch
      %56 = sbr.rel (0) target = $region37
    $region36: #{tpu_custom_call.1} parent=1 // pred_region
      _
    $region37: #{tpu_custom_call.1} parent=1 // pred_fallthru
      _
    // Predicated region
    $region38: #{tpu_custom_call.1} parent=1 // pred_check
      _
    $region39: #{tpu_custom_call.1} parent=1 // pred_check_branch
      %58 = sbr.rel (0) target = $region41
    $region40: #{tpu_custom_call.1} parent=1 // pred_region
      %60 = dma.done [#allocation5], 512
    $region41: #{tpu_custom_call.1} parent=1 // pred_fallthru
      _
    // Predicated region
    $region42: #{tpu_custom_call.1} parent=1 // pred_check
      _
    $region43: #{tpu_custom_call.1} parent=1 // pred_check_branch
      %62 = sbr.rel (0) target = $region45
    $region44: #{tpu_custom_call.1} parent=1 // pred_region
      %64 = dma.done [#allocation8], 512
    $region45: #{tpu_custom_call.1} parent=1 // pred_fallthru
      _
    %v65 = vld [vmem:[%s0] sm:$0xff]
    %v66 = vld [vmem:[%s0 + $0x8] sm:$0xff]
    %v67 = vld [vmem:[%s0 + $0x10] sm:$0xff]
    %v68 = vld [vmem:[%s0 + $0x18] sm:$0xff]
    %v69 = vld [vmem:[%s0 + $0x20] sm:$0xff]
    %v70 = vld [vmem:[%s0 + $0x28] sm:$0xff]
    %v71 = vld [vmem:[%s0 + $0x30] sm:$0xff]
    %v72 = vld [vmem:[%s0 + $0x38] sm:$0xff]
    %v73 = vld [vmem:[%s1] sm:$0xff]
    %v74 = vld [vmem:[%s1 + $0x8] sm:$0xff]
    %v75 = vld [vmem:[%s3] sm:$0x1]
    %v77 = vperm.slane %v75, 0
    %vm79 = vcmask 130048
    %v81 = vsel %vm79, %v65, 0
    %v84 = vsel %vm79, %v66, 0
    %v87 = vsel %vm79, %v67, 0
    %v90 = vsel %vm79, %v68, 0
    %v93 = vsel %vm79, %v69, 0
    %v96 = vsel %vm79, %v70, 0
    %v99 = vsel %vm79, %v71, 0
    %v102 = vsel %vm79, %v72, 0
    %104 = vmatpush.msra.mxu0 0.0
    %105 = vmatpush.msra.mxu0 0.0
    %106 = vmatpush.msra.mxu0 0.0
    %107 = vmatpush.msra.mxu0 0.0
    %108 = vmatpush.msra.mxu0 0.0
    %109 = vmatpush.msra.mxu0 0.0
    %110 = vmatpush.msra.mxu0 0.0
    %111 = vmatpush.msra.mxu0 0.0
    %112 = vmatpush.msra.mxu0 0.0
    %113 = vmatpush.msra.mxu0 0.0
    %114 = vmatpush.msra.mxu0 0.0
    %115 = vmatpush.msra.mxu0 0.0
    %116 = vmatpush.msra.mxu0 0.0
    %117 = vmatpush.msra.mxu0 0.0
    %118 = vmatpush.msra.mxu0 %v74
    %119 = vmatpush.msra.mxu0 %v73
    %120 = vmatmul.f32.gmra.mxu0 %v81
    %v121 = vpop.f32.mrf.mxu0
    %v122 = vadd.f32 %v77, %v121
    %123 = vmatmul.f32.gmra.mxu0 %v84
    %v124 = vpop.f32.mrf.mxu0
    %v125 = vadd.f32 %v77, %v124
    %126 = vmatmul.f32.gmra.mxu0 %v87
    %v127 = vpop.f32.mrf.mxu0
    %v128 = vadd.f32 %v77, %v127
    %129 = vmatmul.f32.gmra.mxu0 %v90
    %v130 = vpop.f32.mrf.mxu0
    %v131 = vadd.f32 %v77, %v130
    %132 = vmatmul.f32.gmra.mxu0 %v93
    %v133 = vpop.f32.mrf.mxu0
    %v134 = vadd.f32 %v77, %v133
    %135 = vmatmul.f32.gmra.mxu0 %v96
    %v136 = vpop.f32.mrf.mxu0
    %v137 = vadd.f32 %v77, %v136
    %138 = vmatmul.f32.gmra.mxu0 %v99
    %v139 = vpop.f32.mrf.mxu0
    %v140 = vadd.f32 %v77, %v139
    %141 = vmatmul.f32.gmra.mxu0 %v102
    %v142 = vpop.f32.mrf.mxu0
    %v143 = vadd.f32 %v77, %v142
    %144 = vdwg.mxu0
    %145 = vst [vmem:[#allocation2] sm:$0xff] %v122
    %146 = vst [vmem:[#allocation2 + $0x8] sm:$0xff] %v125
    %147 = vst [vmem:[#allocation2 + $0x10] sm:$0xff] %v128
    %148 = vst [vmem:[#allocation2 + $0x18] sm:$0xff] %v131
    %149 = vst [vmem:[#allocation2 + $0x20] sm:$0xff] %v134
    %150 = vst [vmem:[#allocation2 + $0x28] sm:$0xff] %v137
    %151 = vst [vmem:[#allocation2 + $0x30] sm:$0xff] %v140
    %152 = vst [vmem:[#allocation2 + $0x38] sm:$0xff] %v143
    %v153 = vld [vmem:[%s2] sm:$0xff]
    %v154 = vld [vmem:[%s2 + $0x8] sm:$0xff]
    %v155 = vld [vmem:[%s2 + $0x10] sm:$0xff]
    %v156 = vld [vmem:[%s2 + $0x18] sm:$0xff]
    %v157 = vld [vmem:[#allocation2] sm:$0xff]
    %vm158 = vcmask 261120
    %v160 = vsel %vm158, 0.0, 0
    %162 = vmatpush.msra.mxu0 0.0
    %163 = vmatpush.msra.mxu0 0.0
    %164 = vmatpush.msra.mxu0 0.0
    %165 = vmatpush.msra.mxu0 0.0
    %166 = vmatpush.msra.mxu0 0.0
    %167 = vmatpush.msra.mxu0 0.0
    %168 = vmatpush.msra.mxu0 0.0
    %169 = vmatpush.msra.mxu0 0.0
    %170 = vmatpush.msra.mxu0 0.0
    %171 = vmatpush.msra.mxu0 0.0
    %172 = vmatpush.msra.mxu0 0.0
    %173 = vmatpush.msra.mxu0 0.0
    %174 = vmatpush.msra.mxu0 %v156
    %175 = vmatpush.msra.mxu0 %v155
    %176 = vmatpush.msra.mxu0 %v154
    %177 = vmatpush.msra.mxu0 %v153
    %178 = vmatmul.f32.gmra.mxu0 %v160
    %v179 = vpop.f32.mrf.mxu0
    %v180 = vadd.f32 0.0, %v179
    %181 = vdwg.mxu0
    %v182 = vadd.f32 %v157, %v180
    %v183 = vxor.u32 %v182, 2147483648
    %v184 = vmul.f32 %v183, 1.442695
    %v185 = vpow.pop %v184
    %v186 = vadd.f32 %v185, 1.0
    %v187 = vrcp.pop %v186
    %v188 = vmul.f32 %v186, %v187
    %v189 = vsub.f32 1.0, %v188
    %v190 = vmul.f32 %v187, %v189
    %v191 = vadd.f32 %v187, %v190
    %vm192 = vweird.f32 %v186
    %vm193 = vweird.f32 %v187
    %vm194 = vmor %vm192, %vm193
    %v195 = vsel %vm194, %v187, %v191
    %v196 = vand.u32 2147483647, %v186
    %vm197 = vcmp.eq.f32.partialorder %v196, 8.507059e+37
    %v198 = vand.u32 %v186, 2147483648
    %v199 = vor.u32 1.1754944e-38, %v198
    %v200 = vsel %vm197, %v199, %v195
    %v201 = vmul.f32 1.0, %v200
    %v202 = vtanh.pop %v182
    %v203 = vmul.f32 %v201, 0.0
    %205 = vrot.lane.b32.xlu0 %v202, 32
    %v206 = vpop.permute.xlu0 %205
    %v208 = vmul.f32 %v201, %v206
    %210 = vrot.lane.b32.xlu0 %v208, 32
    %v211 = vpop.permute.xlu0 %210
    %v213 = vadd.f32 %v203, %v211
    %v214 = vtanh.pop %v213
    %216 = vrot.lane.b32.xlu0 %v214, 32
    %v217 = vpop.permute.xlu0 %216
    %v219 = vmul.f32 %v201, %v217
    %221 = vrot.lane.b32.xlu0 %v219, 64
    %v222 = vpop.permute.xlu0 %221
    %224 = vst.msk [vmem:[#allocation3] sm:$0xff] %vm158, %v222
    %s225 = scalar_lea.vmem [#allocation2], 8
    %v226 = vld [vmem:[%s225] sm:$0xff]
    %v227 = vsel %vm158, %v222, 0
    %229 = vmatpush.msra.mxu0 0.0
    %230 = vmatpush.msra.mxu0 0.0
    %231 = vmatpush.msra.mxu0 0.0
    %232 = vmatpush.msra.mxu0 0.0
    %233 = vmatpush.msra.mxu0 0.0
    %234 = vmatpush.msra.mxu0 0.0
    %235 = vmatpush.msra.mxu0 0.0
    %236 = vmatpush.msra.mxu0 0.0
    %237 = vmatpush.msra.mxu0 0.0
    %238 = vmatpush.msra.mxu0 0.0
    %239 = vmatpush.msra.mxu0 0.0
    %240 = vmatpush.msra.mxu0 0.0
    %241 = vmatpush.msra.mxu0 %v156
    %242 = vmatpush.msra.mxu0 %v155
    %243 = vmatpush.msra.mxu0 %v154
    %244 = vmatpush.msra.mxu0 %v153
    %245 = vmatmul.f32.gmra.mxu0 %v227
    %v246 = vpop.f32.mrf.mxu0
    %v247 = vadd.f32 0.0, %v246
    %248 = vdwg.mxu0
    %v249 = vadd.f32 %v226, %v247
    %v250 = vxor.u32 %v249, 2147483648
    %v251 = vmul.f32 %v250, 1.442695
    %v252 = vpow.pop %v251
    %v253 = vadd.f32 %v252, 1.0
    %v254 = vrcp.pop %v253
    %v255 = vmul.f32 %v253, %v254
    %v256 = vsub.f32 1.0, %v255
    %v257 = vmul.f32 %v254, %v256
    %v258 = vadd.f32 %v254, %v257
    %vm259 = vweird.f32 %v253
    %vm260 = vweird.f32 %v254
    %vm261 = vmor %vm259, %vm260
    %v262 = vsel %vm261, %v254, %v258
    %v263 = vand.u32 2147483647, %v253
    %vm264 = vcmp.eq.f32.partialorder %v263, 8.507059e+37
    %v265 = vand.u32 %v253, 2147483648
    %v266 = vor.u32 1.1754944e-38, %v265
    %v267 = vsel %vm264, %v266, %v262
    %v268 = vmul.f32 1.0, %v267
    %v269 = vtanh.pop %v249
    %v270 = vmul.f32 %v268, %v213
    %272 = vrot.lane.b32.xlu0 %v269, 32
    %v273 = vpop.permute.xlu0 %272
    %v275 = vmul.f32 %v268, %v273
    %277 = vrot.lane.b32.xlu0 %v275, 32
    %v278 = vpop.permute.xlu0 %277
    %v280 = vadd.f32 %v270, %v278
    %v281 = vtanh.pop %v280
    %283 = vrot.lane.b32.xlu0 %v281, 32
    %v284 = vpop.permute.xlu0 %283
    %v286 = vmul.f32 %v268, %v284
    %288 = vrot.lane.b32.xlu0 %v286, 64
    %v289 = vpop.permute.xlu0 %288
    %s291 = scalar_lea.vmem [#allocation3], 8
    %292 = vst.msk [vmem:[%s291] sm:$0xff] %vm158, %v289
    %s293 = scalar_lea.vmem [#allocation2], 16
    %v294 = vld [vmem:[%s293] sm:$0xff]
    %v295 = vsel %vm158, %v289, 0
    %297 = vmatpush.msra.mxu0 0.0
    %298 = vmatpush.msra.mxu0 0.0
    %299 = vmatpush.msra.mxu0 0.0
    %300 = vmatpush.msra.mxu0 0.0
    %301 = vmatpush.msra.mxu0 0.0
    %302 = vmatpush.msra.mxu0 0.0
    %303 = vmatpush.msra.mxu0 0.0
    %304 = vmatpush.msra.mxu0 0.0
    %305 = vmatpush.msra.mxu0 0.0
    %306 = vmatpush.msra.mxu0 0.0
    %307 = vmatpush.msra.mxu0 0.0
    %308 = vmatpush.msra.mxu0 0.0
    %309 = vmatpush.msra.mxu0 %v156
    %310 = vmatpush.msra.mxu0 %v155
    %311 = vmatpush.msra.mxu0 %v154
    %312 = vmatpush.msra.mxu0 %v153
    %313 = vmatmul.f32.gmra.mxu0 %v295
    %v314 = vpop.f32.mrf.mxu0
    %v315 = vadd.f32 0.0, %v314
    %316 = vdwg.mxu0
    %v317 = vadd.f32 %v294, %v315
    %v318 = vxor.u32 %v317, 2147483648
    %v319 = vmul.f32 %v318, 1.442695
    %v320 = vpow.pop %v319
    %v321 = vadd.f32 %v320, 1.0
    %v322 = vrcp.pop %v321
    %v323 = vmul.f32 %v321, %v322
    %v324 = vsub.f32 1.0, %v323
    %v325 = vmul.f32 %v322, %v324
    %v326 = vadd.f32 %v322, %v325
    %vm327 = vweird.f32 %v321
    %vm328 = vweird.f32 %v322
    %vm329 = vmor %vm327, %vm328
    %v330 = vsel %vm329, %v322, %v326
    %v331 = vand.u32 2147483647, %v321
    %vm332 = vcmp.eq.f32.partialorder %v331, 8.507059e+37
    %v333 = vand.u32 %v321, 2147483648
    %v334 = vor.u32 1.1754944e-38, %v333
    %v335 = vsel %vm332, %v334, %v330
    %v336 = vmul.f32 1.0, %v335
    %v337 = vtanh.pop %v317
    %v338 = vmul.f32 %v336, %v280
    %340 = vrot.lane.b32.xlu0 %v337, 32
    %v341 = vpop.permute.xlu0 %340
    %v343 = vmul.f32 %v336, %v341
    %345 = vrot.lane.b32.xlu0 %v343, 32
    %v346 = vpop.permute.xlu0 %345
    %v348 = vadd.f32 %v338, %v346
    %v349 = vtanh.pop %v348
    %351 = vrot.lane.b32.xlu0 %v349, 32
    %v352 = vpop.permute.xlu0 %351
    %v354 = vmul.f32 %v336, %v352
    %356 = vrot.lane.b32.xlu0 %v354, 64
    %v357 = vpop.permute.xlu0 %356
    %s359 = scalar_lea.vmem [#allocation3], 16
    %360 = vst.msk [vmem:[%s359] sm:$0xff] %vm158, %v357
    %s361 = scalar_lea.vmem [#allocation2], 24
    %v362 = vld [vmem:[%s361] sm:$0xff]
    %v363 = vsel %vm158, %v357, 0
    %365 = vmatpush.msra.mxu0 0.0
    %366 = vmatpush.msra.mxu0 0.0
    %367 = vmatpush.msra.mxu0 0.0
    %368 = vmatpush.msra.mxu0 0.0
    %369 = vmatpush.msra.mxu0 0.0
    %370 = vmatpush.msra.mxu0 0.0
    %371 = vmatpush.msra.mxu0 0.0
    %372 = vmatpush.msra.mxu0 0.0
    %373 = vmatpush.msra.mxu0 0.0
    %374 = vmatpush.msra.mxu0 0.0
    %375 = vmatpush.msra.mxu0 0.0
    %376 = vmatpush.msra.mxu0 0.0
    %377 = vmatpush.msra.mxu0 %v156
    %378 = vmatpush.msra.mxu0 %v155
    %379 = vmatpush.msra.mxu0 %v154
    %380 = vmatpush.msra.mxu0 %v153
    %381 = vmatmul.f32.gmra.mxu0 %v363
    %v382 = vpop.f32.mrf.mxu0
    %v383 = vadd.f32 0.0, %v382
    %384 = vdwg.mxu0
    %v385 = vadd.f32 %v362, %v383
    %v386 = vxor.u32 %v385, 2147483648
    %v387 = vmul.f32 %v386, 1.442695
    %v388 = vpow.pop %v387
    %v389 = vadd.f32 %v388, 1.0
    %v390 = vrcp.pop %v389
    %v391 = vmul.f32 %v389, %v390
    %v392 = vsub.f32 1.0, %v391
    %v393 = vmul.f32 %v390, %v392
    %v394 = vadd.f32 %v390, %v393
    %vm395 = vweird.f32 %v389
    %vm396 = vweird.f32 %v390
    %vm397 = vmor %vm395, %vm396
    %v398 = vsel %vm397, %v390, %v394
    %v399 = vand.u32 2147483647, %v389
    %vm400 = vcmp.eq.f32.partialorder %v399, 8.507059e+37
    %v401 = vand.u32 %v389, 2147483648
    %v402 = vor.u32 1.1754944e-38, %v401
    %v403 = vsel %vm400, %v402, %v398
    %v404 = vmul.f32 1.0, %v403
    %v405 = vtanh.pop %v385
    %v406 = vmul.f32 %v404, %v348
    %408 = vrot.lane.b32.xlu0 %v405, 32
    %v409 = vpop.permute.xlu0 %408
    %v411 = vmul.f32 %v404, %v409
    %413 = vrot.lane.b32.xlu0 %v411, 32
    %v414 = vpop.permute.xlu0 %413
    %v416 = vadd.f32 %v406, %v414
    %v417 = vtanh.pop %v416
    %419 = vrot.lane.b32.xlu0 %v417, 32
    %v420 = vpop.permute.xlu0 %419
    %v422 = vmul.f32 %v404, %v420
    %424 = vrot.lane.b32.xlu0 %v422, 64
    %v425 = vpop.permute.xlu0 %424
    %s427 = scalar_lea.vmem [#allocation3], 24
    %428 = vst.msk [vmem:[%s427] sm:$0xff] %vm158, %v425
    %s429 = scalar_lea.vmem [#allocation2], 32
    %v430 = vld [vmem:[%s429] sm:$0xff]
    %v431 = vsel %vm158, %v425, 0
    %433 = vmatpush.msra.mxu0 0.0
    %434 = vmatpush.msra.mxu0 0.0
    %435 = vmatpush.msra.mxu0 0.0
    %436 = vmatpush.msra.mxu0 0.0
    %437 = vmatpush.msra.mxu0 0.0
    %438 = vmatpush.msra.mxu0 0.0
    %439 = vmatpush.msra.mxu0 0.0
    %440 = vmatpush.msra.mxu0 0.0
    %441 = vmatpush.msra.mxu0 0.0
    %442 = vmatpush.msra.mxu0 0.0
    %443 = vmatpush.msra.mxu0 0.0
    %444 = vmatpush.msra.mxu0 0.0
    %445 = vmatpush.msra.mxu0 %v156
    %446 = vmatpush.msra.mxu0 %v155
    %447 = vmatpush.msra.mxu0 %v154
    %448 = vmatpush.msra.mxu0 %v153
    %449 = vmatmul.f32.gmra.mxu0 %v431
    %v450 = vpop.f32.mrf.mxu0
    %v451 = vadd.f32 0.0, %v450
    %452 = vdwg.mxu0
    %v453 = vadd.f32 %v430, %v451
    %v454 = vxor.u32 %v453, 2147483648
    %v455 = vmul.f32 %v454, 1.442695
    %v456 = vpow.pop %v455
    %v457 = vadd.f32 %v456, 1.0
    %v458 = vrcp.pop %v457
    %v459 = vmul.f32 %v457, %v458
    %v460 = vsub.f32 1.0, %v459
    %v461 = vmul.f32 %v458, %v460
    %v462 = vadd.f32 %v458, %v461
    %vm463 = vweird.f32 %v457
    %vm464 = vweird.f32 %v458
    %vm465 = vmor %vm463, %vm464
    %v466 = vsel %vm465, %v458, %v462
    %v467 = vand.u32 2147483647, %v457
    %vm468 = vcmp.eq.f32.partialorder %v467, 8.507059e+37
    %v469 = vand.u32 %v457, 2147483648
    %v470 = vor.u32 1.1754944e-38, %v469
    %v471 = vsel %vm468, %v470, %v466
    %v472 = vmul.f32 1.0, %v471
    %v473 = vtanh.pop %v453
    %v474 = vmul.f32 %v472, %v416
    %476 = vrot.lane.b32.xlu0 %v473, 32
    %v477 = vpop.permute.xlu0 %476
    %v479 = vmul.f32 %v472, %v477
    %481 = vrot.lane.b32.xlu0 %v479, 32
    %v482 = vpop.permute.xlu0 %481
    %v484 = vadd.f32 %v474, %v482
    %v485 = vtanh.pop %v484
    %487 = vrot.lane.b32.xlu0 %v485, 32
    %v488 = vpop.permute.xlu0 %487
    %v490 = vmul.f32 %v472, %v488
    %492 = vrot.lane.b32.xlu0 %v490, 64
    %v493 = vpop.permute.xlu0 %492
    %s495 = scalar_lea.vmem [#allocation3], 32
    %496 = vst.msk [vmem:[%s495] sm:$0xff] %vm158, %v493
    %s497 = scalar_lea.vmem [#allocation2], 40
    %v498 = vld [vmem:[%s497] sm:$0xff]
    %v499 = vsel %vm158, %v493, 0
    %501 = vmatpush.msra.mxu0 0.0
    %502 = vmatpush.msra.mxu0 0.0
    %503 = vmatpush.msra.mxu0 0.0
    %504 = vmatpush.msra.mxu0 0.0
    %505 = vmatpush.msra.mxu0 0.0
    %506 = vmatpush.msra.mxu0 0.0
    %507 = vmatpush.msra.mxu0 0.0
    %508 = vmatpush.msra.mxu0 0.0
    %509 = vmatpush.msra.mxu0 0.0
    %510 = vmatpush.msra.mxu0 0.0
    %511 = vmatpush.msra.mxu0 0.0
    %512 = vmatpush.msra.mxu0 0.0
    %513 = vmatpush.msra.mxu0 %v156
    %514 = vmatpush.msra.mxu0 %v155
    %515 = vmatpush.msra.mxu0 %v154
    %516 = vmatpush.msra.mxu0 %v153
    %517 = vmatmul.f32.gmra.mxu0 %v499
    %v518 = vpop.f32.mrf.mxu0
    %v519 = vadd.f32 0.0, %v518
    %520 = vdwg.mxu0
    %v521 = vadd.f32 %v498, %v519
    %v522 = vxor.u32 %v521, 2147483648
    %v523 = vmul.f32 %v522, 1.442695
    %v524 = vpow.pop %v523
    %v525 = vadd.f32 %v524, 1.0
    %v526 = vrcp.pop %v525
    %v527 = vmul.f32 %v525, %v526
    %v528 = vsub.f32 1.0, %v527
    %v529 = vmul.f32 %v526, %v528
    %v530 = vadd.f32 %v526, %v529
    %vm531 = vweird.f32 %v525
    %vm532 = vweird.f32 %v526
    %vm533 = vmor %vm531, %vm532
    %v534 = vsel %vm533, %v526, %v530
    %v535 = vand.u32 2147483647, %v525
    %vm536 = vcmp.eq.f32.partialorder %v535, 8.507059e+37
    %v537 = vand.u32 %v525, 2147483648
    %v538 = vor.u32 1.1754944e-38, %v537
    %v539 = vsel %vm536, %v538, %v534
    %v540 = vmul.f32 1.0, %v539
    %v541 = vtanh.pop %v521
    %v542 = vmul.f32 %v540, %v484
    %544 = vrot.lane.b32.xlu0 %v541, 32
    %v545 = vpop.permute.xlu0 %544
    %v547 = vmul.f32 %v540, %v545
    %549 = vrot.lane.b32.xlu0 %v547, 32
    %v550 = vpop.permute.xlu0 %549
    %v552 = vadd.f32 %v542, %v550
    %v553 = vtanh.pop %v552
    %555 = vrot.lane.b32.xlu0 %v553, 32
    %v556 = vpop.permute.xlu0 %555
    %v558 = vmul.f32 %v540, %v556
    %560 = vrot.lane.b32.xlu0 %v558, 64
    %v561 = vpop.permute.xlu0 %560
    %s563 = scalar_lea.vmem [#allocation3], 40
    %564 = vst.msk [vmem:[%s563] sm:$0xff] %vm158, %v561
    %s565 = scalar_lea.vmem [#allocation2], 48
    %v566 = vld [vmem:[%s565] sm:$0xff]
    %v567 = vsel %vm158, %v561, 0
    %569 = vmatpush.msra.mxu0 0.0
    %570 = vmatpush.msra.mxu0 0.0
    %571 = vmatpush.msra.mxu0 0.0
    %572 = vmatpush.msra.mxu0 0.0
    %573 = vmatpush.msra.mxu0 0.0
    %574 = vmatpush.msra.mxu0 0.0
    %575 = vmatpush.msra.mxu0 0.0
    %576 = vmatpush.msra.mxu0 0.0
    %577 = vmatpush.msra.mxu0 0.0
    %578 = vmatpush.msra.mxu0 0.0
    %579 = vmatpush.msra.mxu0 0.0
    %580 = vmatpush.msra.mxu0 0.0
    %581 = vmatpush.msra.mxu0 %v156
    %582 = vmatpush.msra.mxu0 %v155
    %583 = vmatpush.msra.mxu0 %v154
    %584 = vmatpush.msra.mxu0 %v153
    %585 = vmatmul.f32.gmra.mxu0 %v567
    %v586 = vpop.f32.mrf.mxu0
    %v587 = vadd.f32 0.0, %v586
    %588 = vdwg.mxu0
    %v589 = vadd.f32 %v566, %v587
    %v590 = vxor.u32 %v589, 2147483648
    %v591 = vmul.f32 %v590, 1.442695
    %v592 = vpow.pop %v591
    %v593 = vadd.f32 %v592, 1.0
    %v594 = vrcp.pop %v593
    %v595 = vmul.f32 %v593, %v594
    %v596 = vsub.f32 1.0, %v595
    %v597 = vmul.f32 %v594, %v596
    %v598 = vadd.f32 %v594, %v597
    %vm599 = vweird.f32 %v593
    %vm600 = vweird.f32 %v594
    %vm601 = vmor %vm599, %vm600
    %v602 = vsel %vm601, %v594, %v598
    %v603 = vand.u32 2147483647, %v593
    %vm604 = vcmp.eq.f32.partialorder %v603, 8.507059e+37
    %v605 = vand.u32 %v593, 2147483648
    %v606 = vor.u32 1.1754944e-38, %v605
    %v607 = vsel %vm604, %v606, %v602
    %v608 = vmul.f32 1.0, %v607
    %v609 = vtanh.pop %v589
    %v610 = vmul.f32 %v608, %v552
    %612 = vrot.lane.b32.xlu0 %v609, 32
    %v613 = vpop.permute.xlu0 %612
    %v615 = vmul.f32 %v608, %v613
    %617 = vrot.lane.b32.xlu0 %v615, 32
    %v618 = vpop.permute.xlu0 %617
    %v620 = vadd.f32 %v610, %v618
    %v621 = vtanh.pop %v620
    %623 = vrot.lane.b32.xlu0 %v621, 32
    %v624 = vpop.permute.xlu0 %623
    %v626 = vmul.f32 %v608, %v624
    %628 = vrot.lane.b32.xlu0 %v626, 64
    %v629 = vpop.permute.xlu0 %628
    %s631 = scalar_lea.vmem [#allocation3], 48
    %632 = vst.msk [vmem:[%s631] sm:$0xff] %vm158, %v629
    %s633 = scalar_lea.vmem [#allocation2], 56
    %v634 = vld [vmem:[%s633] sm:$0xff]
    %v635 = vsel %vm158, %v629, 0
    %637 = vmatpush.msra.mxu0 0.0
    %638 = vmatpush.msra.mxu0 0.0
    %639 = vmatpush.msra.mxu0 0.0
    %640 = vmatpush.msra.mxu0 0.0
    %641 = vmatpush.msra.mxu0 0.0
    %642 = vmatpush.msra.mxu0 0.0
    %643 = vmatpush.msra.mxu0 0.0
    %644 = vmatpush.msra.mxu0 0.0
    %645 = vmatpush.msra.mxu0 0.0
    %646 = vmatpush.msra.mxu0 0.0
    %647 = vmatpush.msra.mxu0 0.0
    %648 = vmatpush.msra.mxu0 0.0
    %649 = vmatpush.msra.mxu0 %v156
    %650 = vmatpush.msra.mxu0 %v155
    %651 = vmatpush.msra.mxu0 %v154
    %652 = vmatpush.msra.mxu0 %v153
    %653 = vmatmul.f32.gmra.mxu0 %v635
    %v654 = vpop.f32.mrf.mxu0
    %v655 = vadd.f32 0.0, %v654
    %656 = vdwg.mxu0
    %v657 = vadd.f32 %v634, %v655
    %v658 = vxor.u32 %v657, 2147483648
    %v659 = vmul.f32 %v658, 1.442695
    %v660 = vpow.pop %v659
    %v661 = vadd.f32 %v660, 1.0
    %v662 = vrcp.pop %v661
    %v663 = vmul.f32 %v661, %v662
    %v664 = vsub.f32 1.0, %v663
    %v665 = vmul.f32 %v662, %v664
    %v666 = vadd.f32 %v662, %v665
    %vm667 = vweird.f32 %v661
    %vm668 = vweird.f32 %v662
    %vm669 = vmor %vm667, %vm668
    %v670 = vsel %vm669, %v662, %v666
    %v671 = vand.u32 2147483647, %v661
    %vm672 = vcmp.eq.f32.partialorder %v671, 8.507059e+37
    %v673 = vand.u32 %v661, 2147483648
    %v674 = vor.u32 1.1754944e-38, %v673
    %v675 = vsel %vm672, %v674, %v670
    %v676 = vmul.f32 1.0, %v675
    %v677 = vtanh.pop %v657
    %v678 = vmul.f32 %v676, %v620
    %680 = vrot.lane.b32.xlu0 %v677, 32
    %v681 = vpop.permute.xlu0 %680
    %v683 = vmul.f32 %v676, %v681
    %685 = vrot.lane.b32.xlu0 %v683, 32
    %v686 = vpop.permute.xlu0 %685
    %v688 = vadd.f32 %v678, %v686
    %v689 = vtanh.pop %v688
    %691 = vrot.lane.b32.xlu0 %v689, 32
    %v692 = vpop.permute.xlu0 %691
    %v694 = vmul.f32 %v676, %v692
    %696 = vrot.lane.b32.xlu0 %v694, 64
    %v697 = vpop.permute.xlu0 %696
    %s699 = scalar_lea.vmem [#allocation3], 56
    %700 = vst.msk [vmem:[%s699] sm:$0xff] %vm158, %v697
    %v701 = vld [vmem:[#allocation3] sm:$0xff]
    %v702 = vld [vmem:[#allocation3 + $0x8] sm:$0xff]
    %v703 = vld [vmem:[#allocation3 + $0x10] sm:$0xff]
    %v704 = vld [vmem:[#allocation3 + $0x18] sm:$0xff]
    %v705 = vld [vmem:[#allocation3 + $0x20] sm:$0xff]
    %v706 = vld [vmem:[#allocation3 + $0x28] sm:$0xff]
    %v707 = vld [vmem:[#allocation3 + $0x30] sm:$0xff]
    %v708 = vld [vmem:[#allocation3 + $0x38] sm:$0xff]
    %v709 = vld [vmem:[%s4] sm:$0xff]
    %v710 = vld [vmem:[%s4 + $0x8] sm:$0xff]
    %v711 = vld [vmem:[%s4 + $0x10] sm:$0xff]
    %v712 = vld [vmem:[%s4 + $0x18] sm:$0xff]
    %v713 = vld [vmem:[%s6] sm:$0x1]
    %v715 = vperm.slane %v713, 0
    %v718 = vsel %vm158, %v701, 0
    %v721 = vsel %vm158, %v702, 0
    %v724 = vsel %vm158, %v703, 0
    %v727 = vsel %vm158, %v704, 0
    %v730 = vsel %vm158, %v705, 0
    %v733 = vsel %vm158, %v706, 0
    %v736 = vsel %vm158, %v707, 0
    %v739 = vsel %vm158, %v708, 0
    %741 = vmatpush.msra.mxu0 0.0
    %742 = vmatpush.msra.mxu0 0.0
    %743 = vmatpush.msra.mxu0 0.0
    %744 = vmatpush.msra.mxu0 0.0
    %745 = vmatpush.msra.mxu0 0.0
    %746 = vmatpush.msra.mxu0 0.0
    %747 = vmatpush.msra.mxu0 0.0
    %748 = vmatpush.msra.mxu0 0.0
    %749 = vmatpush.msra.mxu0 0.0
    %750 = vmatpush.msra.mxu0 0.0
    %751 = vmatpush.msra.mxu0 0.0
    %752 = vmatpush.msra.mxu0 0.0
    %753 = vmatpush.msra.mxu0 %v712
    %754 = vmatpush.msra.mxu0 %v711
    %755 = vmatpush.msra.mxu0 %v710
    %756 = vmatpush.msra.mxu0 %v709
    %757 = vmatmul.f32.gmra.mxu0 %v718
    %v758 = vpop.f32.mrf.mxu0
    %v759 = vadd.f32 %v715, %v758
    %760 = vmatmul.f32.gmra.mxu0 %v721
    %v761 = vpop.f32.mrf.mxu0
    %v762 = vadd.f32 %v715, %v761
    %763 = vmatmul.f32.gmra.mxu0 %v724
    %v764 = vpop.f32.mrf.mxu0
    %v765 = vadd.f32 %v715, %v764
    %766 = vmatmul.f32.gmra.mxu0 %v727
    %v767 = vpop.f32.mrf.mxu0
    %v768 = vadd.f32 %v715, %v767
    %769 = vmatmul.f32.gmra.mxu0 %v730
    %v770 = vpop.f32.mrf.mxu0
    %v771 = vadd.f32 %v715, %v770
    %772 = vmatmul.f32.gmra.mxu0 %v733
    %v773 = vpop.f32.mrf.mxu0
    %v774 = vadd.f32 %v715, %v773
    %775 = vmatmul.f32.gmra.mxu0 %v736
    %v776 = vpop.f32.mrf.mxu0
    %v777 = vadd.f32 %v715, %v776
    %778 = vmatmul.f32.gmra.mxu0 %v739
    %v779 = vpop.f32.mrf.mxu0
    %v780 = vadd.f32 %v715, %v779
    %781 = vdwg.mxu0
    %782 = vst [vmem:[#allocation2] sm:$0xff] %v759
    %783 = vst [vmem:[#allocation2 + $0x8] sm:$0xff] %v762
    %784 = vst [vmem:[#allocation2 + $0x10] sm:$0xff] %v765
    %785 = vst [vmem:[#allocation2 + $0x18] sm:$0xff] %v768
    %786 = vst [vmem:[#allocation2 + $0x20] sm:$0xff] %v771
    %787 = vst [vmem:[#allocation2 + $0x28] sm:$0xff] %v774
    %788 = vst [vmem:[#allocation2 + $0x30] sm:$0xff] %v777
    %789 = vst [vmem:[#allocation2 + $0x38] sm:$0xff] %v780
    %v790 = vld [vmem:[#allocation4] sm:$0xff]
    %v791 = vld [vmem:[#allocation4 + $0x8] sm:$0xff]
    %v792 = vld [vmem:[#allocation4 + $0x10] sm:$0xff]
    %v793 = vld [vmem:[#allocation4 + $0x18] sm:$0xff]
    %v794 = vld [vmem:[#allocation2] sm:$0xff]
    %795 = vmatpush.msra.mxu0 0.0
    %796 = vmatpush.msra.mxu0 0.0
    %797 = vmatpush.msra.mxu0 0.0
    %798 = vmatpush.msra.mxu0 0.0
    %799 = vmatpush.msra.mxu0 0.0
    %800 = vmatpush.msra.mxu0 0.0
    %801 = vmatpush.msra.mxu0 0.0
    %802 = vmatpush.msra.mxu0 0.0
    %803 = vmatpush.msra.mxu0 0.0
    %804 = vmatpush.msra.mxu0 0.0
    %805 = vmatpush.msra.mxu0 0.0
    %806 = vmatpush.msra.mxu0 0.0
    %807 = vmatpush.msra.mxu0 %v793
    %808 = vmatpush.msra.mxu0 %v792
    %809 = vmatpush.msra.mxu0 %v791
    %810 = vmatpush.msra.mxu0 %v790
    %811 = vmatmul.f32.gmra.mxu0 %v160
    %v812 = vpop.f32.mrf.mxu0
    %v813 = vadd.f32 0.0, %v812
    %814 = vdwg.mxu0
    %v815 = vadd.f32 %v794, %v813
    %v816 = vxor.u32 %v815, 2147483648
    %v817 = vmul.f32 %v816, 1.442695
    %v818 = vpow.pop %v817
    %v819 = vadd.f32 %v818, 1.0
    %v820 = vrcp.pop %v819
    %v821 = vmul.f32 %v819, %v820
    %v822 = vsub.f32 1.0, %v821
    %v823 = vmul.f32 %v820, %v822
    %v824 = vadd.f32 %v820, %v823
    %vm825 = vweird.f32 %v819
    %vm826 = vweird.f32 %v820
    %vm827 = vmor %vm825, %vm826
    %v828 = vsel %vm827, %v820, %v824
    %v829 = vand.u32 2147483647, %v819
    %vm830 = vcmp.eq.f32.partialorder %v829, 8.507059e+37
    %v831 = vand.u32 %v819, 2147483648
    %v832 = vor.u32 1.1754944e-38, %v831
    %v833 = vsel %vm830, %v832, %v828
    %v834 = vmul.f32 1.0, %v833
    %v835 = vtanh.pop %v815
    %v836 = vmul.f32 %v834, 0.0
    %838 = vrot.lane.b32.xlu0 %v835, 32
    %v839 = vpop.permute.xlu0 %838
    %v841 = vmul.f32 %v834, %v839
    %843 = vrot.lane.b32.xlu0 %v841, 32
    %v844 = vpop.permute.xlu0 %843
    %v846 = vadd.f32 %v836, %v844
    %v847 = vtanh.pop %v846
    %849 = vrot.lane.b32.xlu0 %v847, 32
    %v850 = vpop.permute.xlu0 %849
    %v852 = vmul.f32 %v834, %v850
    %v853 = vld [vmem:[%s225] sm:$0xff]
    %855 = vrot.lane.b32.xlu0 %v852, 64
    %v856 = vpop.permute.xlu0 %855
    %v857 = vsel %vm158, %v856, 0
    %859 = vmatpush.msra.mxu0 0.0
    %860 = vmatpush.msra.mxu0 0.0
    %861 = vmatpush.msra.mxu0 0.0
    %862 = vmatpush.msra.mxu0 0.0
    %863 = vmatpush.msra.mxu0 0.0
    %864 = vmatpush.msra.mxu0 0.0
    %865 = vmatpush.msra.mxu0 0.0
    %866 = vmatpush.msra.mxu0 0.0
    %867 = vmatpush.msra.mxu0 0.0
    %868 = vmatpush.msra.mxu0 0.0
    %869 = vmatpush.msra.mxu0 0.0
    %870 = vmatpush.msra.mxu0 0.0
    %871 = vmatpush.msra.mxu0 %v793
    %872 = vmatpush.msra.mxu0 %v792
    %873 = vmatpush.msra.mxu0 %v791
    %874 = vmatpush.msra.mxu0 %v790
    %875 = vmatmul.f32.gmra.mxu0 %v857
    %v876 = vpop.f32.mrf.mxu0
    %v877 = vadd.f32 0.0, %v876
    %878 = vdwg.mxu0
    %v879 = vadd.f32 %v853, %v877
    %v880 = vxor.u32 %v879, 2147483648
    %v881 = vmul.f32 %v880, 1.442695
    %v882 = vpow.pop %v881
    %v883 = vadd.f32 %v882, 1.0
    %v884 = vrcp.pop %v883
    %v885 = vmul.f32 %v883, %v884
    %v886 = vsub.f32 1.0, %v885
    %v887 = vmul.f32 %v884, %v886
    %v888 = vadd.f32 %v884, %v887
    %vm889 = vweird.f32 %v883
    %vm890 = vweird.f32 %v884
    %vm891 = vmor %vm889, %vm890
    %v892 = vsel %vm891, %v884, %v888
    %v893 = vand.u32 2147483647, %v883
    %vm894 = vcmp.eq.f32.partialorder %v893, 8.507059e+37
    %v895 = vand.u32 %v883, 2147483648
    %v896 = vor.u32 1.1754944e-38, %v895
    %v897 = vsel %vm894, %v896, %v892
    %v898 = vmul.f32 1.0, %v897
    %v899 = vtanh.pop %v879
    %v900 = vmul.f32 %v898, %v846
    %902 = vrot.lane.b32.xlu0 %v899, 32
    %v903 = vpop.permute.xlu0 %902
    %v905 = vmul.f32 %v898, %v903
    %907 = vrot.lane.b32.xlu0 %v905, 32
    %v908 = vpop.permute.xlu0 %907
    %v910 = vadd.f32 %v900, %v908
    %v911 = vtanh.pop %v910
    %913 = vrot.lane.b32.xlu0 %v911, 32
    %v914 = vpop.permute.xlu0 %913
    %v916 = vmul.f32 %v898, %v914
    %v917 = vld [vmem:[%s293] sm:$0xff]
    %919 = vrot.lane.b32.xlu0 %v916, 64
    %v920 = vpop.permute.xlu0 %919
    %v921 = vsel %vm158, %v920, 0
    %923 = vmatpush.msra.mxu0 0.0
    %924 = vmatpush.msra.mxu0 0.0
    %925 = vmatpush.msra.mxu0 0.0
    %926 = vmatpush.msra.mxu0 0.0
    %927 = vmatpush.msra.mxu0 0.0
    %928 = vmatpush.msra.mxu0 0.0
    %929 = vmatpush.msra.mxu0 0.0
    %930 = vmatpush.msra.mxu0 0.0
    %931 = vmatpush.msra.mxu0 0.0
    %932 = vmatpush.msra.mxu0 0.0
    %933 = vmatpush.msra.mxu0 0.0
    %934 = vmatpush.msra.mxu0 0.0
    %935 = vmatpush.msra.mxu0 %v793
    %936 = vmatpush.msra.mxu0 %v792
    %937 = vmatpush.msra.mxu0 %v791
    %938 = vmatpush.msra.mxu0 %v790
    %939 = vmatmul.f32.gmra.mxu0 %v921
    %v940 = vpop.f32.mrf.mxu0
    %v941 = vadd.f32 0.0, %v940
    %942 = vdwg.mxu0
    %v943 = vadd.f32 %v917, %v941
    %v944 = vxor.u32 %v943, 2147483648
    %v945 = vmul.f32 %v944, 1.442695
    %v946 = vpow.pop %v945
    %v947 = vadd.f32 %v946, 1.0
    %v948 = vrcp.pop %v947
    %v949 = vmul.f32 %v947, %v948
    %v950 = vsub.f32 1.0, %v949
    %v951 = vmul.f32 %v948, %v950
    %v952 = vadd.f32 %v948, %v951
    %vm953 = vweird.f32 %v947
    %vm954 = vweird.f32 %v948
    %vm955 = vmor %vm953, %vm954
    %v956 = vsel %vm955, %v948, %v952
    %v957 = vand.u32 2147483647, %v947
    %vm958 = vcmp.eq.f32.partialorder %v957, 8.507059e+37
    %v959 = vand.u32 %v947, 2147483648
    %v960 = vor.u32 1.1754944e-38, %v959
    %v961 = vsel %vm958, %v960, %v956
    %v962 = vmul.f32 1.0, %v961
    %v963 = vtanh.pop %v943
    %v964 = vmul.f32 %v962, %v910
    %966 = vrot.lane.b32.xlu0 %v963, 32
    %v967 = vpop.permute.xlu0 %966
    %v969 = vmul.f32 %v962, %v967
    %971 = vrot.lane.b32.xlu0 %v969, 32
    %v972 = vpop.permute.xlu0 %971
    %v974 = vadd.f32 %v964, %v972
    %v975 = vtanh.pop %v974
    %977 = vrot.lane.b32.xlu0 %v975, 32
    %v978 = vpop.permute.xlu0 %977
    %v980 = vmul.f32 %v962, %v978
    %v981 = vld [vmem:[%s361] sm:$0xff]
    %983 = vrot.lane.b32.xlu0 %v980, 64
    %v984 = vpop.permute.xlu0 %983
    %v985 = vsel %vm158, %v984, 0
    %987 = vmatpush.msra.mxu0 0.0
    %988 = vmatpush.msra.mxu0 0.0
    %989 = vmatpush.msra.mxu0 0.0
    %990 = vmatpush.msra.mxu0 0.0
    %991 = vmatpush.msra.mxu0 0.0
    %992 = vmatpush.msra.mxu0 0.0
    %993 = vmatpush.msra.mxu0 0.0
    %994 = vmatpush.msra.mxu0 0.0
    %995 = vmatpush.msra.mxu0 0.0
    %996 = vmatpush.msra.mxu0 0.0
    %997 = vmatpush.msra.mxu0 0.0
    %998 = vmatpush.msra.mxu0 0.0
    %999 = vmatpush.msra.mxu0 %v793
    %1000 = vmatpush.msra.mxu0 %v792
    %1001 = vmatpush.msra.mxu0 %v791
    %1002 = vmatpush.msra.mxu0 %v790
    %1003 = vmatmul.f32.gmra.mxu0 %v985
    %v1004 = vpop.f32.mrf.mxu0
    %v1005 = vadd.f32 0.0, %v1004
    %1006 = vdwg.mxu0
    %v1007 = vadd.f32 %v981, %v1005
    %v1008 = vxor.u32 %v1007, 2147483648
    %v1009 = vmul.f32 %v1008, 1.442695
    %v1010 = vpow.pop %v1009
    %v1011 = vadd.f32 %v1010, 1.0
    %v1012 = vrcp.pop %v1011
    %v1013 = vmul.f32 %v1011, %v1012
    %v1014 = vsub.f32 1.0, %v1013
    %v1015 = vmul.f32 %v1012, %v1014
    %v1016 = vadd.f32 %v1012, %v1015
    %vm1017 = vweird.f32 %v1011
    %vm1018 = vweird.f32 %v1012
    %vm1019 = vmor %vm1017, %vm1018
    %v1020 = vsel %vm1019, %v1012, %v1016
    %v1021 = vand.u32 2147483647, %v1011
    %vm1022 = vcmp.eq.f32.partialorder %v1021, 8.507059e+37
    %v1023 = vand.u32 %v1011, 2147483648
    %v1024 = vor.u32 1.1754944e-38, %v1023
    %v1025 = vsel %vm1022, %v1024, %v1020
    %v1026 = vmul.f32 1.0, %v1025
    %v1027 = vtanh.pop %v1007
    %v1028 = vmul.f32 %v1026, %v974
    %1030 = vrot.lane.b32.xlu0 %v1027, 32
    %v1031 = vpop.permute.xlu0 %1030
    %v1033 = vmul.f32 %v1026, %v1031
    %1035 = vrot.lane.b32.xlu0 %v1033, 32
    %v1036 = vpop.permute.xlu0 %1035
    %v1038 = vadd.f32 %v1028, %v1036
    %v1039 = vtanh.pop %v1038
    %1041 = vrot.lane.b32.xlu0 %v1039, 32
    %v1042 = vpop.permute.xlu0 %1041
    %v1044 = vmul.f32 %v1026, %v1042
    %v1045 = vld [vmem:[%s429] sm:$0xff]
    %1047 = vrot.lane.b32.xlu0 %v1044, 64
    %v1048 = vpop.permute.xlu0 %1047
    %v1049 = vsel %vm158, %v1048, 0
    %1051 = vmatpush.msra.mxu0 0.0
    %1052 = vmatpush.msra.mxu0 0.0
    %1053 = vmatpush.msra.mxu0 0.0
    %1054 = vmatpush.msra.mxu0 0.0
    %1055 = vmatpush.msra.mxu0 0.0
    %1056 = vmatpush.msra.mxu0 0.0
    %1057 = vmatpush.msra.mxu0 0.0
    %1058 = vmatpush.msra.mxu0 0.0
    %1059 = vmatpush.msra.mxu0 0.0
    %1060 = vmatpush.msra.mxu0 0.0
    %1061 = vmatpush.msra.mxu0 0.0
    %1062 = vmatpush.msra.mxu0 0.0
    %1063 = vmatpush.msra.mxu0 %v793
    %1064 = vmatpush.msra.mxu0 %v792
    %1065 = vmatpush.msra.mxu0 %v791
    %1066 = vmatpush.msra.mxu0 %v790
    %1067 = vmatmul.f32.gmra.mxu0 %v1049
    %v1068 = vpop.f32.mrf.mxu0
    %v1069 = vadd.f32 0.0, %v1068
    %1070 = vdwg.mxu0
    %v1071 = vadd.f32 %v1045, %v1069
    %v1072 = vxor.u32 %v1071, 2147483648
    %v1073 = vmul.f32 %v1072, 1.442695
    %v1074 = vpow.pop %v1073
    %v1075 = vadd.f32 %v1074, 1.0
    %v1076 = vrcp.pop %v1075
    %v1077 = vmul.f32 %v1075, %v1076
    %v1078 = vsub.f32 1.0, %v1077
    %v1079 = vmul.f32 %v1076, %v1078
    %v1080 = vadd.f32 %v1076, %v1079
    %vm1081 = vweird.f32 %v1075
    %vm1082 = vweird.f32 %v1076
    %vm1083 = vmor %vm1081, %vm1082
    %v1084 = vsel %vm1083, %v1076, %v1080
    %v1085 = vand.u32 2147483647, %v1075
    %vm1086 = vcmp.eq.f32.partialorder %v1085, 8.507059e+37
    %v1087 = vand.u32 %v1075, 2147483648
    %v1088 = vor.u32 1.1754944e-38, %v1087
    %v1089 = vsel %vm1086, %v1088, %v1084
    %v1090 = vmul.f32 1.0, %v1089
    %v1091 = vtanh.pop %v1071
    %v1092 = vmul.f32 %v1090, %v1038
    %1094 = vrot.lane.b32.xlu0 %v1091, 32
    %v1095 = vpop.permute.xlu0 %1094
    %v1097 = vmul.f32 %v1090, %v1095
    %1099 = vrot.lane.b32.xlu0 %v1097, 32
    %v1100 = vpop.permute.xlu0 %1099
    %v1102 = vadd.f32 %v1092, %v1100
    %v1103 = vtanh.pop %v1102
    %1105 = vrot.lane.b32.xlu0 %v1103, 32
    %v1106 = vpop.permute.xlu0 %1105
    %v1108 = vmul.f32 %v1090, %v1106
    %v1109 = vld [vmem:[%s497] sm:$0xff]
    %1111 = vrot.lane.b32.xlu0 %v1108, 64
    %v1112 = vpop.permute.xlu0 %1111
    %v1113 = vsel %vm158, %v1112, 0
    %1115 = vmatpush.msra.mxu0 0.0
    %1116 = vmatpush.msra.mxu0 0.0
    %1117 = vmatpush.msra.mxu0 0.0
    %1118 = vmatpush.msra.mxu0 0.0
    %1119 = vmatpush.msra.mxu0 0.0
    %1120 = vmatpush.msra.mxu0 0.0
    %1121 = vmatpush.msra.mxu0 0.0
    %1122 = vmatpush.msra.mxu0 0.0
    %1123 = vmatpush.msra.mxu0 0.0
    %1124 = vmatpush.msra.mxu0 0.0
    %1125 = vmatpush.msra.mxu0 0.0
    %1126 = vmatpush.msra.mxu0 0.0
    %1127 = vmatpush.msra.mxu0 %v793
    %1128 = vmatpush.msra.mxu0 %v792
    %1129 = vmatpush.msra.mxu0 %v791
    %1130 = vmatpush.msra.mxu0 %v790
    %1131 = vmatmul.f32.gmra.mxu0 %v1113
    %v1132 = vpop.f32.mrf.mxu0
    %v1133 = vadd.f32 0.0, %v1132
    %1134 = vdwg.mxu0
    %v1135 = vadd.f32 %v1109, %v1133
    %v1136 = vxor.u32 %v1135, 2147483648
    %v1137 = vmul.f32 %v1136, 1.442695
    %v1138 = vpow.pop %v1137
    %v1139 = vadd.f32 %v1138, 1.0
    %v1140 = vrcp.pop %v1139
    %v1141 = vmul.f32 %v1139, %v1140
    %v1142 = vsub.f32 1.0, %v1141
    %v1143 = vmul.f32 %v1140, %v1142
    %v1144 = vadd.f32 %v1140, %v1143
    %vm1145 = vweird.f32 %v1139
    %vm1146 = vweird.f32 %v1140
    %vm1147 = vmor %vm1145, %vm1146
    %v1148 = vsel %vm1147, %v1140, %v1144
    %v1149 = vand.u32 2147483647, %v1139
    %vm1150 = vcmp.eq.f32.partialorder %v1149, 8.507059e+37
    %v1151 = vand.u32 %v1139, 2147483648
    %v1152 = vor.u32 1.1754944e-38, %v1151
    %v1153 = vsel %vm1150, %v1152, %v1148
    %v1154 = vmul.f32 1.0, %v1153
    %v1155 = vtanh.pop %v1135
    %v1156 = vmul.f32 %v1154, %v1102
    %1158 = vrot.lane.b32.xlu0 %v1155, 32
    %v1159 = vpop.permute.xlu0 %1158
    %v1161 = vmul.f32 %v1154, %v1159
    %1163 = vrot.lane.b32.xlu0 %v1161, 32
    %v1164 = vpop.permute.xlu0 %1163
    %v1166 = vadd.f32 %v1156, %v1164
    %v1167 = vtanh.pop %v1166
    %1169 = vrot.lane.b32.xlu0 %v1167, 32
    %v1170 = vpop.permute.xlu0 %1169
    %v1172 = vmul.f32 %v1154, %v1170
    %v1173 = vld [vmem:[%s565] sm:$0xff]
    %1175 = vrot.lane.b32.xlu0 %v1172, 64
    %v1176 = vpop.permute.xlu0 %1175
    %v1177 = vsel %vm158, %v1176, 0
    %1179 = vmatpush.msra.mxu0 0.0
    %1180 = vmatpush.msra.mxu0 0.0
    %1181 = vmatpush.msra.mxu0 0.0
    %1182 = vmatpush.msra.mxu0 0.0
    %1183 = vmatpush.msra.mxu0 0.0
    %1184 = vmatpush.msra.mxu0 0.0
    %1185 = vmatpush.msra.mxu0 0.0
    %1186 = vmatpush.msra.mxu0 0.0
    %1187 = vmatpush.msra.mxu0 0.0
    %1188 = vmatpush.msra.mxu0 0.0
    %1189 = vmatpush.msra.mxu0 0.0
    %1190 = vmatpush.msra.mxu0 0.0
    %1191 = vmatpush.msra.mxu0 %v793
    %1192 = vmatpush.msra.mxu0 %v792
    %1193 = vmatpush.msra.mxu0 %v791
    %1194 = vmatpush.msra.mxu0 %v790
    %1195 = vmatmul.f32.gmra.mxu0 %v1177
    %v1196 = vpop.f32.mrf.mxu0
    %v1197 = vadd.f32 0.0, %v1196
    %1198 = vdwg.mxu0
    %v1199 = vadd.f32 %v1173, %v1197
    %v1200 = vxor.u32 %v1199, 2147483648
    %v1201 = vmul.f32 %v1200, 1.442695
    %v1202 = vpow.pop %v1201
    %v1203 = vadd.f32 %v1202, 1.0
    %v1204 = vrcp.pop %v1203
    %v1205 = vmul.f32 %v1203, %v1204
    %v1206 = vsub.f32 1.0, %v1205
    %v1207 = vmul.f32 %v1204, %v1206
    %v1208 = vadd.f32 %v1204, %v1207
    %vm1209 = vweird.f32 %v1203
    %vm1210 = vweird.f32 %v1204
    %vm1211 = vmor %vm1209, %vm1210
    %v1212 = vsel %vm1211, %v1204, %v1208
    %v1213 = vand.u32 2147483647, %v1203
    %vm1214 = vcmp.eq.f32.partialorder %v1213, 8.507059e+37
    %v1215 = vand.u32 %v1203, 2147483648
    %v1216 = vor.u32 1.1754944e-38, %v1215
    %v1217 = vsel %vm1214, %v1216, %v1212
    %v1218 = vmul.f32 1.0, %v1217
    %v1219 = vtanh.pop %v1199
    %v1220 = vmul.f32 %v1218, %v1166
    %1222 = vrot.lane.b32.xlu0 %v1219, 32
    %v1223 = vpop.permute.xlu0 %1222
    %v1225 = vmul.f32 %v1218, %v1223
    %1227 = vrot.lane.b32.xlu0 %v1225, 32
    %v1228 = vpop.permute.xlu0 %1227
    %v1230 = vadd.f32 %v1220, %v1228
    %v1231 = vtanh.pop %v1230
    %1233 = vrot.lane.b32.xlu0 %v1231, 32
    %v1234 = vpop.permute.xlu0 %1233
    %v1236 = vmul.f32 %v1218, %v1234
    %v1237 = vld [vmem:[%s633] sm:$0xff]
    %1239 = vrot.lane.b32.xlu0 %v1236, 64
    %v1240 = vpop.permute.xlu0 %1239
    %v1241 = vsel %vm158, %v1240, 0
    %1243 = vmatpush.msra.mxu0 0.0
    %1244 = vmatpush.msra.mxu0 0.0
    %1245 = vmatpush.msra.mxu0 0.0
    %1246 = vmatpush.msra.mxu0 0.0
    %1247 = vmatpush.msra.mxu0 0.0
    %1248 = vmatpush.msra.mxu0 0.0
    %1249 = vmatpush.msra.mxu0 0.0
    %1250 = vmatpush.msra.mxu0 0.0
    %1251 = vmatpush.msra.mxu0 0.0
    %1252 = vmatpush.msra.mxu0 0.0
    %1253 = vmatpush.msra.mxu0 0.0
    %1254 = vmatpush.msra.mxu0 0.0
    %1255 = vmatpush.msra.mxu0 %v793
    %1256 = vmatpush.msra.mxu0 %v792
    %1257 = vmatpush.msra.mxu0 %v791
    %1258 = vmatpush.msra.mxu0 %v790
    %1259 = vmatmul.f32.gmra.mxu0 %v1241
    %v1260 = vpop.f32.mrf.mxu0
    %v1261 = vadd.f32 0.0, %v1260
    %1262 = vdwg.mxu0
    %v1263 = vadd.f32 %v1237, %v1261
    %v1264 = vxor.u32 %v1263, 2147483648
    %v1265 = vmul.f32 %v1264, 1.442695
    %v1266 = vpow.pop %v1265
    %v1267 = vadd.f32 %v1266, 1.0
    %v1268 = vrcp.pop %v1267
    %v1269 = vmul.f32 %v1267, %v1268
    %v1270 = vsub.f32 1.0, %v1269
    %v1271 = vmul.f32 %v1268, %v1270
    %v1272 = vadd.f32 %v1268, %v1271
    %vm1273 = vweird.f32 %v1267
    %vm1274 = vweird.f32 %v1268
    %vm1275 = vmor %vm1273, %vm1274
    %v1276 = vsel %vm1275, %v1268, %v1272
    %v1277 = vand.u32 2147483647, %v1267
    %vm1278 = vcmp.eq.f32.partialorder %v1277, 8.507059e+37
    %v1279 = vand.u32 %v1267, 2147483648
    %v1280 = vor.u32 1.1754944e-38, %v1279
    %v1281 = vsel %vm1278, %v1280, %v1276
    %v1282 = vmul.f32 1.0, %v1281
    %v1283 = vtanh.pop %v1263
    %v1284 = vmul.f32 %v1282, %v1230
    %1286 = vrot.lane.b32.xlu0 %v1283, 32
    %v1287 = vpop.permute.xlu0 %1286
    %v1289 = vmul.f32 %v1282, %v1287
    %1291 = vrot.lane.b32.xlu0 %v1289, 32
    %v1292 = vpop.permute.xlu0 %1291
    %v1294 = vadd.f32 %v1284, %v1292
    %v1295 = vtanh.pop %v1294
    %1297 = vrot.lane.b32.xlu0 %v1295, 32
    %v1298 = vpop.permute.xlu0 %1297
    %v1300 = vmul.f32 %v1282, %v1298
    %v1301 = vmax.f32 %v1300, 0.0
    %v1302 = vld [vmem:[#allocation7] sm:$0xff]
    %v1303 = vld [vmem:[#allocation7 + $0x8] sm:$0xff]
    %v1304 = vld [vmem:[#allocation7 + $0x10] sm:$0xff]
    %v1305 = vld [vmem:[#allocation7 + $0x18] sm:$0xff]
    %v1306 = vld [vmem:[%s8] sm:$0x1]
    %v1308 = vperm.slane %v1306, 0
    %1311 = vrot.lane.b32.xlu0 %v1301, 64
    %v1312 = vpop.permute.xlu0 %1311
    %v1313 = vsel %vm158, %v1312, 0
    %1315 = vmatpush.msra.mxu0 0.0
    %1316 = vmatpush.msra.mxu0 0.0
    %1317 = vmatpush.msra.mxu0 0.0
    %1318 = vmatpush.msra.mxu0 0.0
    %1319 = vmatpush.msra.mxu0 0.0
    %1320 = vmatpush.msra.mxu0 0.0
    %1321 = vmatpush.msra.mxu0 0.0
    %1322 = vmatpush.msra.mxu0 0.0
    %1323 = vmatpush.msra.mxu0 0.0
    %1324 = vmatpush.msra.mxu0 0.0
    %1325 = vmatpush.msra.mxu0 0.0
    %1326 = vmatpush.msra.mxu0 0.0
    %1327 = vmatpush.msra.mxu0 %v1305
    %1328 = vmatpush.msra.mxu0 %v1304
    %1329 = vmatpush.msra.mxu0 %v1303
    %1330 = vmatpush.msra.mxu0 %v1302
    %1331 = vmatmul.f32.gmra.mxu0 %v1313
    %v1332 = vpop.f32.mrf.mxu0
    %v1333 = vadd.f32 %v1308, %v1332
    %1334 = vdwg.mxu0
    %1335 = vst [vmem:[#allocation9] sm:$0xff] %v1333
    // Predicated region
    $region46: #{tpu_custom_call.1} parent=1 // pred_check
      _
    $region47: #{tpu_custom_call.1} parent=1 // pred_check_branch
      %1337 = sbr.rel (0) target = $region49
    $region48: #{tpu_custom_call.1} parent=1 // pred_region
      %1339 = vsyncadd [#allocation6], 0
      %s1341 = sshll.u32 [#allocation9], 4
      %s1342 = int_to_ptr.vmem [resolvable:$true] %s1341
      %s1343 = sshll.u32 %s9, 4
      %s1344 = int_to_ptr.hbm [resolvable:$true] %s1343
      %1346 = dma.vmem_to_hbm [thread:$0]  %s1342, 128, %s1344, [#allocation6]
    $region49: #{tpu_custom_call.1} parent=1 // pred_fallthru
      _
    // Predicated region
    $region50: #{tpu_custom_call.1} parent=1 // pred_check
      _
    $region51: #{tpu_custom_call.1} parent=1 // pred_check_branch
      %1348 = sbr.rel (0) target = $region53
    $region52: #{tpu_custom_call.1} parent=1 // pred_region
      %1350 = dma.done [#allocation6], 128
    $region53: #{tpu_custom_call.1} parent=1 // pred_fallthru
      _
    %1351 = vsyncpa [#allocation5], 1
    %1352 = vsyncpa [#allocation8], 1
    %1353 = vsyncpa [#allocation6], 1

</llo_original>
